<compile_context>
chip_gen: v7x
topology: tpu7x:2x2x1
jax: 0.10.0
libtpu: 0.0.40
codegen_flags: <defaults>
</compile_context>

<pallas_src>
import functools
import math

import jax
import jax.numpy as jnp
from jax import lax
from jax.experimental import pallas as pl
from jax.experimental.pallas import tpu as pltpu


# ----------------------------- Pallas kernels ------------------------------ #

def _qkv_proj_kernel(x_ref, w_ref, q_ref, k_ref, v_ref, *, nhead, head_dim):
    # x_ref: (1, tp, D); w_ref: (3D, D) PyTorch layout; outputs: (1, H, tp, Dh).
    y = lax.dot_general(
        x_ref[0], w_ref[...],
        dimension_numbers=(((1,), (1,)), ((), ())),
        preferred_element_type=jnp.float32,
    )                                       # (tp, 3D), f32 accumulation
    y = y.astype(q_ref.dtype)
    d = nhead * head_dim
    # Head split happens in VMEM (cheap) instead of an XLA HBM transpose.
    for h in range(nhead):
        lo = h * head_dim
        hi = lo + head_dim
        q_ref[0, h, :, :] = y[:, lo:hi]
        k_ref[0, h, :, :] = y[:, d + lo:d + hi]
        v_ref[0, h, :, :] = y[:, 2 * d + lo:2 * d + hi]


def _attn_kernel(diff_ref, cq_ref, sq_ref, ck_ref, sk_ref,
                 q_ref, k_ref, v_ref, o_ref, m_sc, l_sc, acc_sc,
                 *, w0, w1, w0b, nkvb, half, blk):
    # q/k/v_ref: (1, 1, tq, Dh) for one (batch, head, q-block, kv-block) step.
    qi = pl.program_id(2)
    ki = pl.program_id(3)

    @pl.when(ki == 0)
    def _():
        m_sc[...] = jnp.full_like(m_sc, -1e30)
        l_sc[...] = jnp.zeros_like(l_sc)
        acc_sc[...] = jnp.zeros_like(acc_sc)

    raw = qi - w0b + ki                       # un-clamped kv block index
    valid = jnp.logical_and(raw >= 0, raw < nkvb)

    @pl.when(valid)
    def _():
        q = q_ref[0, 0]                       # (tq, Dh), input dtype
        k = k_ref[0, 0]                       # (tk, Dh)

        # rotate-half for non-interleaved RoPE (rotary_dim == head_dim); the
        # sign and the 1/sqrt(Dh) scale are folded into the cos/sin tables.
        # TODO(synk): pltpu.roll(x, half, axis=-1) is an XLU alternative to
        # this half-swap once its padded-lane behaviour is verified for Dh<128.
        def half_swap(x):
            return jnp.concatenate([x[:, half:], x[:, :half]], axis=-1)

        qr = (q * cq_ref[...] + half_swap(q) * sq_ref[...]).astype(q.dtype)
        kr = (k * ck_ref[...] + half_swap(k) * sk_ref[...]).astype(k.dtype)

        s = lax.dot_general(                  # (tq, tk), f32 accumulation
            qr, kr, dimension_numbers=(((1,), (1,)), ((), ())),
            preferred_element_type=jnp.float32)

        # band mask from the precomputed in-block (col - row) table + block
        # offset; no per-step iota generation.
        diff = diff_ref[...] + (ki - w0b) * blk
        keep = jnp.logical_and(diff >= -w0, diff <= w1)
        s = jnp.where(keep, s, -1e30)

        m_prev = m_sc[...]
        m_new = jnp.maximum(m_prev, jnp.max(s, axis=-1, keepdims=True))
        alpha = jnp.exp(m_prev - m_new)
        p = jnp.exp(s - m_new)
        l_sc[...] = alpha * l_sc[...] + jnp.sum(p, axis=-1, keepdims=True)
        acc_sc[...] = alpha * acc_sc[...] + jnp.dot(
            p.astype(v_ref.dtype), v_ref[0, 0],
            preferred_element_type=jnp.float32)
        m_sc[...] = m_new

    @pl.when(ki == pl.num_programs(3) - 1)
    def _():
        l = l_sc[...]
        inv = pl.reciprocal(l, approx=True)   # EUP slot
        inv = inv * (2.0 - l * inv)           # one Newton step for f32 accuracy
        o_ref[0, 0, :, :] = (acc_sc[...] * inv).astype(o_ref.dtype)


def _out_proj_kernel(a_ref, w_ref, b_ref, o_ref, *, nhead):
    # a_ref: (1, H, tp, Dh) head-major; w_ref: (D, D) PyTorch layout; b: (1, D).
    a_cat = jnp.concatenate([a_ref[0, h] for h in range(nhead)], axis=-1)
    y = lax.dot_general(
        a_cat, w_ref[...],
        dimension_numbers=(((1,), (1,)), ((), ())),
        preferred_element_type=jnp.float32)
    o_ref[0, :, :] = (y + b_ref[...]).astype(o_ref.dtype)


# ------------------------------- wrapper ----------------------------------- #

def multi_head_attention(x, params, *, nhead, attn_window, rotary_base=10000.0,
                         q_block=None, proj_block=None):
    N, T, D = x.shape
    H = nhead
    Dh = D // H
    half = Dh // 2
    assert D % H == 0 and Dh % 2 == 0

    w0, w1 = int(attn_window[0]), int(attn_window[1])
    # TODO(synk): the module's default attn_window=None -> (-1,-1) is degenerate
    # in the non-flash PyTorch path (everything masked); only explicit
    # non-negative sliding windows are supported here.
    assert w0 >= 0 and w1 >= 0, "explicit non-negative sliding window required"

    tq = q_block if q_block is not None else (128 if T % 128 == 0 else T)
    tp = proj_block if proj_block is not None else (256 if T % 256 == 0 else T)
    assert T % tq == 0 and T % tp == 0

    w_qkv = params["Wqkv"]           # (3D, D) PyTorch layout, used untransposed
    w_out = params["out_proj_w"]     # (D, D)  PyTorch layout, used untransposed
    b_out = params["out_proj_b"]     # (D,)

    # --- fused QKV projection + head split (no qkv bias) ---
    q, k, v = pl.pallas_call(
        functools.partial(_qkv_proj_kernel, nhead=H, head_dim=Dh),
        out_shape=tuple(jax.ShapeDtypeStruct((N, H, T, Dh), x.dtype)
                        for _ in range(3)),
        grid=(N, T // tp),
        in_specs=[
            pl.BlockSpec((1, tp, D), lambda n, t: (n, t, 0)),
            pl.BlockSpec((3 * D, D), lambda n, t: (0, 0)),
        ],
        out_specs=tuple(pl.BlockSpec((1, H, tp, Dh), lambda n, t: (n, 0, t, 0))
                        for _ in range(3)),
        compiler_params=pltpu.CompilerParams(
            dimension_semantics=("parallel", "parallel")),
    )(x, w_qkv)

    # --- rotary tables (non-interleaved, rotary_dim == head_dim) ---
    scale = 1.0 / math.sqrt(Dh)
    inv_freq = 1.0 / (rotary_base ** (jnp.arange(0, Dh, 2, dtype=jnp.float32) / Dh))
    freqs = jnp.outer(jnp.arange(T, dtype=jnp.float32), inv_freq)     # (T, Dh/2)
    cos_t = jnp.cos(freqs)
    sin_t = jnp.sin(freqs)
    cos_full = jnp.concatenate([cos_t, cos_t], axis=-1)               # (T, Dh)
    sin_full = jnp.concatenate([-sin_t, sin_t], axis=-1)              # sign-folded
    cos_q = cos_full * scale                                          # scale folded
    sin_q = sin_full * scale
    cos_k = cos_full
    sin_k = sin_full

    # precomputed in-block (col - row) offsets (no per-step iota in the kernel)
    ii = jnp.arange(tq, dtype=jnp.int32)
    diff_base = ii[None, :] - ii[:, None]                             # (tq, tq)

    nqb = T // tq
    nkvb = nqb
    w0b = (w0 + tq - 1) // tq                      # kv blocks to the left
    kb = w0b + (tq - 1 + w1) // tq + 1             # kv blocks per query block

    def kv_block(qi, ki):
        return jnp.clip(qi - w0b + ki, 0, nkvb - 1)

    # --- banded sliding-window attention with online softmax ---
    # TODO(synk): when head_dim * heads_per_block is a multiple of 128 (e.g.
    # Dh=64 with 2 heads per step), read/write 128-lane-dense column blocks of
    # packed (N,T,3D)/(N,T,D) layouts instead for fully dense stores.
    attn = pl.pallas_call(
        functools.partial(_attn_kernel, w0=w0, w1=w1, w0b=w0b, nkvb=nkvb,
                          half=half, blk=tq),
        out_shape=jax.ShapeDtypeStruct((N, H, T, Dh), x.dtype),
        grid=(N, H, nqb, kb),
        in_specs=[
            pl.BlockSpec((tq, tq), lambda n, h, qi, ki: (0, 0)),          # diff
            pl.BlockSpec((tq, Dh), lambda n, h, qi, ki: (qi, 0)),         # cos_q
            pl.BlockSpec((tq, Dh), lambda n, h, qi, ki: (qi, 0)),         # sin_q
            pl.BlockSpec((tq, Dh), lambda n, h, qi, ki: (kv_block(qi, ki), 0)),
            pl.BlockSpec((tq, Dh), lambda n, h, qi, ki: (kv_block(qi, ki), 0)),
            pl.BlockSpec((1, 1, tq, Dh), lambda n, h, qi, ki: (n, h, qi, 0)),
            pl.BlockSpec((1, 1, tq, Dh),
                         lambda n, h, qi, ki: (n, h, kv_block(qi, ki), 0)),
            pl.BlockSpec((1, 1, tq, Dh),
                         lambda n, h, qi, ki: (n, h, kv_block(qi, ki), 0)),
        ],
        out_specs=pl.BlockSpec((1, 1, tq, Dh), lambda n, h, qi, ki: (n, h, qi, 0)),
        scratch_shapes=[
            pltpu.VMEM((tq, 1), jnp.float32),    # running max
            pltpu.VMEM((tq, 1), jnp.float32),    # running sum
            pltpu.VMEM((tq, Dh), jnp.float32),   # output accumulator
        ],
        compiler_params=pltpu.CompilerParams(
            dimension_semantics=("parallel", "parallel", "parallel", "arbitrary")),
    )(diff_base, cos_q, sin_q, cos_k, sin_k, q, k, v)

    # --- output projection + bias (head concat done in VMEM) ---
    out = pl.pallas_call(
        functools.partial(_out_proj_kernel, nhead=H),
        out_shape=jax.ShapeDtypeStruct((N, T, D), x.dtype),
        grid=(N, T // tp),
        in_specs=[
            pl.BlockSpec((1, H, tp, Dh), lambda n, t: (n, 0, t, 0)),
            pl.BlockSpec((D, D), lambda n, t: (0, 0)),
            pl.BlockSpec((1, D), lambda n, t: (0, 0)),
        ],
        out_specs=pl.BlockSpec((1, tp, D), lambda n, t: (n, t, 0)),
        compiler_params=pltpu.CompilerParams(
            dimension_semantics=("parallel", "parallel")),
    )(attn, w_out, b_out.reshape(1, D))
    return out


# --------------------------- pure-JAX reference ----------------------------- #

def _reference(x, params, *, nhead, attn_window, rotary_base=10000.0):
    N, T, D = x.shape
    Dh = D // nhead
    qkv = (x @ params["Wqkv"].T).reshape(N, T, 3, nhead, Dh)
    inv_freq = 1.0 / (rotary_base ** (jnp.arange(0, Dh, 2, dtype=jnp.float32) / Dh))
    freqs = jnp.outer(jnp.arange(T, dtype=jnp.float32), inv_freq)
    cos = jnp.cos(freqs)[None, :, None, :]
    sin = jnp.sin(freqs)[None, :, None, :]

    def rope(x4):  # (N, T, H, Dh)
        x1, x2 = x4[..., : Dh // 2], x4[..., Dh // 2:]
        return jnp.concatenate([x1 * cos - x2 * sin, x2 * cos + x1 * sin], axis=-1)

    q = jnp.transpose(rope(qkv[:, :, 0]), (0, 2, 1, 3))
    k = jnp.transpose(rope(qkv[:, :, 1]), (0, 2, 1, 3))
    v = jnp.transpose(qkv[:, :, 2], (0, 2, 1, 3))
    s = jnp.einsum("nhqd,nhkd->nhqk", q, k) / jnp.sqrt(jnp.float32(Dh))
    i = jnp.arange(T)[:, None]
    j = jnp.arange(T)[None, :]
    mask = (j - i >= -attn_window[0]) & (j - i <= attn_window[1])
    s = jnp.where(mask, s, -jnp.inf)
    p = jax.nn.softmax(s, axis=-1)
    o = jnp.einsum("nhqk,nhkd->nhqd", p, v)
    o = jnp.transpose(o, (0, 2, 1, 3)).reshape(N, T, D)
    return o @ params["out_proj_w"].T + params["out_proj_b"]


# ---------------------------------- main ------------------------------------ #

if __name__ == "__main__":
    d_model, nhead, N, T = 64, 4, 2, 128
    attn_window = (32, 16)   # explicit sliding window (default (-1,-1) is degenerate)

    key = jax.random.PRNGKey(0)
    kx, kw1, kw2, kb = jax.random.split(key, 4)
    x = jax.random.normal(kx, (N, T, d_model), dtype=jnp.float32)
    params = {
        "Wqkv": jax.random.normal(kw1, (3 * d_model, d_model), jnp.float32)
        * (1.0 / math.sqrt(d_model)),
        "out_proj_w": jax.random.normal(kw2, (d_model, d_model), jnp.float32)
        * (1.0 / math.sqrt(d_model)),
        "out_proj_b": jax.random.normal(kb, (d_model,), jnp.float32) * 0.01,
    }

    out = multi_head_attention(x, params, nhead=nhead, attn_window=attn_window,
                               q_block=32, proj_block=64)
    out = jax.block_until_ready(out)

    ref = _reference(x, params, nhead=nhead, attn_window=attn_window)
    assert out.shape == (N, T, d_model)
    err = float(jnp.max(jnp.abs(out - ref)))
    assert err < 5e-4, f"mismatch vs JAX reference: {err}"
    print("KERNEL_OK")
</pallas_src>

<mosaic_0001>
module attributes {stable_mosaic.version = 11 : i64} {
  func.func @_qkv_proj_kernel(%arg0: i32, %arg1: i32, %arg2: memref<1x64x64xf32, #tpu.memory_space<vmem>>, %arg3: memref<192x64xf32, #tpu.memory_space<vmem>>, %arg4: memref<1x4x64x16xf32, #tpu.memory_space<vmem>>, %arg5: memref<1x4x64x16xf32, #tpu.memory_space<vmem>>, %arg6: memref<1x4x64x16xf32, #tpu.memory_space<vmem>>) attributes {dimension_semantics = [#tpu.dimension_semantics<parallel>, #tpu.dimension_semantics<parallel>], iteration_bounds = array<i64: 2, 2>, scalar_prefetch = 0 : i64, scratch_operands = 0 : i64, tpu.core_type = #tpu.core_type<tc>, window_params = [{transform_indices = @transform_0, window_bounds = array<i64: 1, 64, 64>}, {pipeline_mode = #tpu.pipeline_mode<synchronous>, transform_indices = @transform_1, window_bounds = array<i64: 192, 64>}, {transform_indices = @transform_2, window_bounds = array<i64: 1, 4, 64, 16>}, {transform_indices = @transform_3, window_bounds = array<i64: 1, 4, 64, 16>}, {transform_indices = @transform_4, window_bounds = array<i64: 1, 4, 64, 16>}]} {
    %c0 = arith.constant 0 : index
    %c0_0 = arith.constant 0 : index
    %c0_1 = arith.constant 0 : index
    %0 = vector.load %arg2[%c0, %c0_0, %c0_1] : memref<1x64x64xf32, #tpu.memory_space<vmem>>, vector<1x64x64xf32>
    %1 = vector.shape_cast %0 : vector<1x64x64xf32> to vector<64x64xf32>
    %c0_2 = arith.constant 0 : index
    %c0_3 = arith.constant 0 : index
    %2 = vector.load %arg3[%c0_2, %c0_3] : memref<192x64xf32, #tpu.memory_space<vmem>>, vector<192x64xf32>
    %cst = arith.constant dense<0.000000e+00> : vector<64x192xf32>
    %3 = tpu.matmul %1, %2, %cst {dimension_numbers = #tpu.dot_dimension_numbers<[1], [1], [0], [0], [0, 0, 1, 0], [], []>} : vector<64x64xf32>, vector<192x64xf32>, vector<64x192xf32> -> vector<64x192xf32>
    %4 = vector.extract_strided_slice %3 {offsets = [0, 0], sizes = [64, 16], strides = [1, 1]} : vector<64x192xf32> to vector<64x16xf32>
    %c0_4 = arith.constant 0 : index
    %c0_5 = arith.constant 0 : index
    %c0_6 = arith.constant 0 : index
    %c0_7 = arith.constant 0 : index
    %5 = vector.load %arg4[%c0_4, %c0_5, %c0_6, %c0_7] : memref<1x4x64x16xf32, #tpu.memory_space<vmem>>, vector<1x1x64x16xf32>
    %6 = vector.shape_cast %5 : vector<1x1x64x16xf32> to vector<64x16xf32>
    %7 = vector.shape_cast %4 : vector<64x16xf32> to vector<1x1x64x16xf32>
    tpu.vector_store %arg4[%c0_4, %c0_5, %c0_6, %c0_7], %7 {strides = array<i32>} : memref<1x4x64x16xf32, #tpu.memory_space<vmem>>, vector<1x1x64x16xf32>,
    %8 = vector.extract_strided_slice %3 {offsets = [0, 64], sizes = [64, 16], strides = [1, 1]} : vector<64x192xf32> to vector<64x16xf32>
    %c0_8 = arith.constant 0 : index
    %c0_9 = arith.constant 0 : index
    %c0_10 = arith.constant 0 : index
    %c0_11 = arith.constant 0 : index
    %9 = vector.load %arg5[%c0_8, %c0_9, %c0_10, %c0_11] : memref<1x4x64x16xf32, #tpu.memory_space<vmem>>, vector<1x1x64x16xf32>
    %10 = vector.shape_cast %9 : vector<1x1x64x16xf32> to vector<64x16xf32>
    %11 = vector.shape_cast %8 : vector<64x16xf32> to vector<1x1x64x16xf32>
    tpu.vector_store %arg5[%c0_8, %c0_9, %c0_10, %c0_11], %11 {strides = array<i32>} : memref<1x4x64x16xf32, #tpu.memory_space<vmem>>, vector<1x1x64x16xf32>,
    %12 = vector.extract_strided_slice %3 {offsets = [0, 128], sizes = [64, 16], strides = [1, 1]} : vector<64x192xf32> to vector<64x16xf32>
    %c0_12 = arith.constant 0 : index
    %c0_13 = arith.constant 0 : index
    %c0_14 = arith.constant 0 : index
    %c0_15 = arith.constant 0 : index
    %13 = vector.load %arg6[%c0_12, %c0_13, %c0_14, %c0_15] : memref<1x4x64x16xf32, #tpu.memory_space<vmem>>, vector<1x1x64x16xf32>
    %14 = vector.shape_cast %13 : vector<1x1x64x16xf32> to vector<64x16xf32>
    %15 = vector.shape_cast %12 : vector<64x16xf32> to vector<1x1x64x16xf32>
    tpu.vector_store %arg6[%c0_12, %c0_13, %c0_14, %c0_15], %15 {strides = array<i32>} : memref<1x4x64x16xf32, #tpu.memory_space<vmem>>, vector<1x1x64x16xf32>,
    %16 = vector.extract_strided_slice %3 {offsets = [0, 16], sizes = [64, 16], strides = [1, 1]} : vector<64x192xf32> to vector<64x16xf32>
    %c0_16 = arith.constant 0 : index
    %c1 = arith.constant 1 : index
    %c0_17 = arith.constant 0 : index
    %c0_18 = arith.constant 0 : index
    %17 = vector.load %arg4[%c0_16, %c1, %c0_17, %c0_18] : memref<1x4x64x16xf32, #tpu.memory_space<vmem>>, vector<1x1x64x16xf32>
    %18 = vector.shape_cast %17 : vector<1x1x64x16xf32> to vector<64x16xf32>
    %19 = vector.shape_cast %16 : vector<64x16xf32> to vector<1x1x64x16xf32>
    tpu.vector_store %arg4[%c0_16, %c1, %c0_17, %c0_18], %19 {strides = array<i32>} : memref<1x4x64x16xf32, #tpu.memory_space<vmem>>, vector<1x1x64x16xf32>,
    %20 = vector.extract_strided_slice %3 {offsets = [0, 80], sizes = [64, 16], strides = [1, 1]} : vector<64x192xf32> to vector<64x16xf32>
    %c0_19 = arith.constant 0 : index
    %c1_20 = arith.constant 1 : index
    %c0_21 = arith.constant 0 : index
    %c0_22 = arith.constant 0 : index
    %21 = vector.load %arg5[%c0_19, %c1_20, %c0_21, %c0_22] : memref<1x4x64x16xf32, #tpu.memory_space<vmem>>, vector<1x1x64x16xf32>
    %22 = vector.shape_cast %21 : vector<1x1x64x16xf32> to vector<64x16xf32>
    %23 = vector.shape_cast %20 : vector<64x16xf32> to vector<1x1x64x16xf32>
    tpu.vector_store %arg5[%c0_19, %c1_20, %c0_21, %c0_22], %23 {strides = array<i32>} : memref<1x4x64x16xf32, #tpu.memory_space<vmem>>, vector<1x1x64x16xf32>,
    %24 = vector.extract_strided_slice %3 {offsets = [0, 144], sizes = [64, 16], strides = [1, 1]} : vector<64x192xf32> to vector<64x16xf32>
    %c0_23 = arith.constant 0 : index
    %c1_24 = arith.constant 1 : index
    %c0_25 = arith.constant 0 : index
    %c0_26 = arith.constant 0 : index
    %25 = vector.load %arg6[%c0_23, %c1_24, %c0_25, %c0_26] : memref<1x4x64x16xf32, #tpu.memory_space<vmem>>, vector<1x1x64x16xf32>
    %26 = vector.shape_cast %25 : vector<1x1x64x16xf32> to vector<64x16xf32>
    %27 = vector.shape_cast %24 : vector<64x16xf32> to vector<1x1x64x16xf32>
    tpu.vector_store %arg6[%c0_23, %c1_24, %c0_25, %c0_26], %27 {strides = array<i32>} : memref<1x4x64x16xf32, #tpu.memory_space<vmem>>, vector<1x1x64x16xf32>,
    %28 = vector.extract_strided_slice %3 {offsets = [0, 32], sizes = [64, 16], strides = [1, 1]} : vector<64x192xf32> to vector<64x16xf32>
    %c0_27 = arith.constant 0 : index
    %c2 = arith.constant 2 : index
    %c0_28 = arith.constant 0 : index
    %c0_29 = arith.constant 0 : index
    %29 = vector.load %arg4[%c0_27, %c2, %c0_28, %c0_29] : memref<1x4x64x16xf32, #tpu.memory_space<vmem>>, vector<1x1x64x16xf32>
    %30 = vector.shape_cast %29 : vector<1x1x64x16xf32> to vector<64x16xf32>
    %31 = vector.shape_cast %28 : vector<64x16xf32> to vector<1x1x64x16xf32>
    tpu.vector_store %arg4[%c0_27, %c2, %c0_28, %c0_29], %31 {strides = array<i32>} : memref<1x4x64x16xf32, #tpu.memory_space<vmem>>, vector<1x1x64x16xf32>,
    %32 = vector.extract_strided_slice %3 {offsets = [0, 96], sizes = [64, 16], strides = [1, 1]} : vector<64x192xf32> to vector<64x16xf32>
    %c0_30 = arith.constant 0 : index
    %c2_31 = arith.constant 2 : index
    %c0_32 = arith.constant 0 : index
    %c0_33 = arith.constant 0 : index
    %33 = vector.load %arg5[%c0_30, %c2_31, %c0_32, %c0_33] : memref<1x4x64x16xf32, #tpu.memory_space<vmem>>, vector<1x1x64x16xf32>
    %34 = vector.shape_cast %33 : vector<1x1x64x16xf32> to vector<64x16xf32>
    %35 = vector.shape_cast %32 : vector<64x16xf32> to vector<1x1x64x16xf32>
    tpu.vector_store %arg5[%c0_30, %c2_31, %c0_32, %c0_33], %35 {strides = array<i32>} : memref<1x4x64x16xf32, #tpu.memory_space<vmem>>, vector<1x1x64x16xf32>,
    %36 = vector.extract_strided_slice %3 {offsets = [0, 160], sizes = [64, 16], strides = [1, 1]} : vector<64x192xf32> to vector<64x16xf32>
    %c0_34 = arith.constant 0 : index
    %c2_35 = arith.constant 2 : index
    %c0_36 = arith.constant 0 : index
    %c0_37 = arith.constant 0 : index
    %37 = vector.load %arg6[%c0_34, %c2_35, %c0_36, %c0_37] : memref<1x4x64x16xf32, #tpu.memory_space<vmem>>, vector<1x1x64x16xf32>
    %38 = vector.shape_cast %37 : vector<1x1x64x16xf32> to vector<64x16xf32>
    %39 = vector.shape_cast %36 : vector<64x16xf32> to vector<1x1x64x16xf32>
    tpu.vector_store %arg6[%c0_34, %c2_35, %c0_36, %c0_37], %39 {strides = array<i32>} : memref<1x4x64x16xf32, #tpu.memory_space<vmem>>, vector<1x1x64x16xf32>,
    %40 = vector.extract_strided_slice %3 {offsets = [0, 48], sizes = [64, 16], strides = [1, 1]} : vector<64x192xf32> to vector<64x16xf32>
    %c0_38 = arith.constant 0 : index
    %c3 = arith.constant 3 : index
    %c0_39 = arith.constant 0 : index
    %c0_40 = arith.constant 0 : index
    %41 = vector.load %arg4[%c0_38, %c3, %c0_39, %c0_40] : memref<1x4x64x16xf32, #tpu.memory_space<vmem>>, vector<1x1x64x16xf32>
    %42 = vector.shape_cast %41 : vector<1x1x64x16xf32> to vector<64x16xf32>
    %43 = vector.shape_cast %40 : vector<64x16xf32> to vector<1x1x64x16xf32>
    tpu.vector_store %arg4[%c0_38, %c3, %c0_39, %c0_40], %43 {strides = array<i32>} : memref<1x4x64x16xf32, #tpu.memory_space<vmem>>, vector<1x1x64x16xf32>,
    %44 = vector.extract_strided_slice %3 {offsets = [0, 112], sizes = [64, 16], strides = [1, 1]} : vector<64x192xf32> to vector<64x16xf32>
    %c0_41 = arith.constant 0 : index
    %c3_42 = arith.constant 3 : index
    %c0_43 = arith.constant 0 : index
    %c0_44 = arith.constant 0 : index
    %45 = vector.load %arg5[%c0_41, %c3_42, %c0_43, %c0_44] : memref<1x4x64x16xf32, #tpu.memory_space<vmem>>, vector<1x1x64x16xf32>
    %46 = vector.shape_cast %45 : vector<1x1x64x16xf32> to vector<64x16xf32>
    %47 = vector.shape_cast %44 : vector<64x16xf32> to vector<1x1x64x16xf32>
    tpu.vector_store %arg5[%c0_41, %c3_42, %c0_43, %c0_44], %47 {strides = array<i32>} : memref<1x4x64x16xf32, #tpu.memory_space<vmem>>, vector<1x1x64x16xf32>,
    %48 = vector.extract_strided_slice %3 {offsets = [0, 176], sizes = [64, 16], strides = [1, 1]} : vector<64x192xf32> to vector<64x16xf32>
    %c0_45 = arith.constant 0 : index
    %c3_46 = arith.constant 3 : index
    %c0_47 = arith.constant 0 : index
    %c0_48 = arith.constant 0 : index
    %49 = vector.load %arg6[%c0_45, %c3_46, %c0_47, %c0_48] : memref<1x4x64x16xf32, #tpu.memory_space<vmem>>, vector<1x1x64x16xf32>
    %50 = vector.shape_cast %49 : vector<1x1x64x16xf32> to vector<64x16xf32>
    %51 = vector.shape_cast %48 : vector<64x16xf32> to vector<1x1x64x16xf32>
    tpu.vector_store %arg6[%c0_45, %c3_46, %c0_47, %c0_48], %51 {strides = array<i32>} : memref<1x4x64x16xf32, #tpu.memory_space<vmem>>, vector<1x1x64x16xf32>,
    return
  }
  func.func @transform_0(%arg0: i32, %arg1: i32) -> (i32, i32, i32) {
    %c0_i32 = arith.constant 0 : i32
    %c0_i32_0 = arith.constant 0 : i32
    return %arg0, %arg1, %c0_i32 : i32, i32, i32
  }
  func.func @transform_1(%arg0: i32, %arg1: i32) -> (i32, i32) {
    %c0_i32 = arith.constant 0 : i32
    %c0_i32_0 = arith.constant 0 : i32
    %c0_i32_1 = arith.constant 0 : i32
    return %c0_i32, %c0_i32_0 : i32, i32
  }
  func.func @transform_2(%arg0: i32, %arg1: i32) -> (i32, i32, i32, i32) {
    %c0_i32 = arith.constant 0 : i32
    %c0_i32_0 = arith.constant 0 : i32
    %c0_i32_1 = arith.constant 0 : i32
    return %arg0, %c0_i32, %arg1, %c0_i32_0 : i32, i32, i32, i32
  }
  func.func @transform_3(%arg0: i32, %arg1: i32) -> (i32, i32, i32, i32) {
    %c0_i32 = arith.constant 0 : i32
    %c0_i32_0 = arith.constant 0 : i32
    %c0_i32_1 = arith.constant 0 : i32
    return %arg0, %c0_i32, %arg1, %c0_i32_0 : i32, i32, i32, i32
  }
  func.func @transform_4(%arg0: i32, %arg1: i32) -> (i32, i32, i32, i32) {
    %c0_i32 = arith.constant 0 : i32
    %c0_i32_0 = arith.constant 0 : i32
    %c0_i32_1 = arith.constant 0 : i32
    return %arg0, %c0_i32, %arg1, %c0_i32_0 : i32, i32, i32, i32
  }
}

</mosaic_0001>

<llo_original>
// kernel: tpu_custom_call.1
$region0: #{tpu_custom_call.1}
  #allocation0 [shape = 'u32[]', space=smem, size = 0x4, offset = 0x4, fixed_abs, tag = 'smem constant byte address 0x4 - core index']
  #allocation1 [shape = 'u32[144,128]{1,0:T(1,128)}', space=vmem, size = 0x12000, scoped, tag = 'internal scratch']
  %s0 = inlined_call_operand.vmem [shape: f32[2,128,64], index: 0, kind: input, shape index: {}]
  %s1 = inlined_call_operand.vmem [shape: f32[192,64], index: 1, kind: input, shape index: {}]
  %s2 = inlined_call_operand.vmem [shape: f32[2,4,128,16], index: 2, kind: output, shape index: {0}]
  %s3 = inlined_call_operand.vmem [shape: f32[2,4,128,16], index: 3, kind: output, shape index: {1}]
  %s4 = inlined_call_operand.vmem [shape: f32[2,4,128,16], index: 4, kind: output, shape index: {2}]
  %5 = xla_tuple %s2, %s3, %s4
  %s6 = sld [smem:[#allocation0]]
  $region159: #{tpu_custom_call.1} parent=0
    _
  %s8 = ssub.s32 1, %s6
  %s9 = scalar_select 0, %s8, %s6
  $region1: #{tpu_custom_call.1} parent=0
    #allocation2 [shape = 'u8[262144]{0}', space=vmem, size = 0x40000, scoped, tag = 'output window, operand 0']
    #allocation3 [shape = 'u8[262144]{0}', space=vmem, size = 0x40000, scoped, tag = 'output window, operand 1']
    #allocation4 [shape = 'u8[262144]{0}', space=vmem, size = 0x40000, scoped, tag = 'output window, operand 2']
    loop: start=0, step=1, limit=6
    $region2: #{tpu_custom_call.1} parent=1 // loop_pre_header
      _
    $region3: #{tpu_custom_call.1} parent=1 // loop_header
      %s11 = sphi 0, %s15
      %p12 = scmp.ge.s32.totalorder %s11, 6
      %s18 = sphi 0, %s30
      %s19 = sphi 0, %s26
      %s20 = sphi 0, %s18
      %s21 = sphi 0, %s19
      %s22 = sphi 0, %s20
      %s23 = sphi 0, %s21
      %s35 = sphi 0, %s37
      %s38 = sphi 0, %s35
      %s39 = sphi 0, %s38
      %s55 = sphi 0, %s39
      %s59 = sphi 0, %s59
      %s61 = sphi 0, %s59
      %s62 = sphi 0, %s61
      %s76 = sphi 0, %s62
      %s84 = sphi 0, %s86
      %s87 = sphi 0, %s84
      %s88 = sphi 0, %s87
      %s104 = sphi 0, %s88
      %s112 = sphi 0, %s114
      %s115 = sphi 0, %s112
      %s116 = sphi 0, %s115
      %s132 = sphi 0, %s116
      %s140 = sphi 0, %s142
      %s143 = sphi 0, %s140
      %s144 = sphi 0, %s143
      %s160 = sphi 0, %s144
    $region4: #{tpu_custom_call.1} parent=1 // loop_header_branch
      %14 = sbr.rel (%p12) target = $region8
    $region5: #{tpu_custom_call.1} parent=1 // loop_body
      %s16 = ssub.s32 %s11, 1
      %s17 = ssub.s32 %s11, 2
      %s24 = sadd.s32 1, %s19
      %p25 = scmp.ge.s32.totalorder %s24, 2
      %s26 = scalar_select %p25, 0, %s24
      %s27 = sadd.s32 1, %s18
      %s28 = scalar_select %p25, %s27, %s18
      %p29 = scmp.ge.s32.totalorder %s28, 2
      %s30 = scalar_select %p29, 0, %s28
      %s31 = ssub.s32 %s18, %s30
      %s32 = ssub.s32 %s19, %s26
      %s33 = sor.u32 %s31, %s32
      %p34 = scmp.eq.s32.totalorder %s33, 0
      %s36 = sadd.s32 %s35, 1
      %s37 = scalar_select %p34, %s35, %s36
      %p40 = pneg %p34
      %p41 = scmp.eq.s32.totalorder %s11, 3
      %p42 = por %p40, %p41
      %p43 = scmp.ne.s32.totalorder %s35, %s38
      %p44 = scmp.eq.s32.totalorder %s11, 0
      %p45 = por %p43, %p44
      %p46 = scmp.ne.s32.totalorder %s35, %s38
      %p47 = scmp.eq.s32.totalorder %s16, 3
      %p48 = por %p46, %p47
      %p49 = scmp.ne.s32.totalorder %s38, %s39
      %p50 = scmp.eq.s32.totalorder %s16, 0
      %p51 = por %p49, %p50
      %p52 = scmp.ne.s32.totalorder %s38, %s39
      %p53 = scmp.eq.s32.totalorder %s17, 3
      %p54 = por %p52, %p53
      %p56 = scmp.ne.s32.totalorder %s39, %s55
      %p57 = scmp.eq.s32.totalorder %s17, 0
      %p58 = por %p56, %p57
      %s60 = sadd.s32 %s59, 1
      %p63 = scmp.eq.s32.totalorder %s11, 3
      %p64 = scmp.ne.s32.totalorder %s59, %s61
      %p65 = scmp.eq.s32.totalorder %s11, 0
      %p66 = por %p64, %p65
      %p67 = scmp.ne.s32.totalorder %s59, %s61
      %p68 = scmp.eq.s32.totalorder %s16, 3
      %p69 = por %p67, %p68
      %p70 = scmp.ne.s32.totalorder %s61, %s62
      %p71 = scmp.eq.s32.totalorder %s16, 0
      %p72 = por %p70, %p71
      %p73 = scmp.ne.s32.totalorder %s61, %s62
      %p74 = scmp.eq.s32.totalorder %s17, 3
      %p75 = por %p73, %p74
      %p77 = scmp.ne.s32.totalorder %s62, %s76
      %p78 = scmp.eq.s32.totalorder %s17, 0
      %p79 = por %p77, %p78
      %s80 = ssub.s32 %s18, %s30
      %s81 = ssub.s32 %s19, %s26
      %s82 = sor.u32 %s80, %s81
      %p83 = scmp.eq.s32.totalorder %s82, 0
      %s85 = sadd.s32 %s84, 1
      %s86 = scalar_select %p83, %s84, %s85
      %p89 = pneg %p83
      %p90 = scmp.eq.s32.totalorder %s11, 3
      %p91 = por %p89, %p90
      %p92 = scmp.ne.s32.totalorder %s84, %s87
      %p93 = scmp.eq.s32.totalorder %s11, 0
      %p94 = por %p92, %p93
      %p95 = scmp.ne.s32.totalorder %s84, %s87
      %p96 = scmp.eq.s32.totalorder %s16, 3
      %p97 = por %p95, %p96
      %p98 = scmp.ne.s32.totalorder %s87, %s88
      %p99 = scmp.eq.s32.totalorder %s16, 0
      %p100 = por %p98, %p99
      %p101 = scmp.ne.s32.totalorder %s87, %s88
      %p102 = scmp.eq.s32.totalorder %s17, 3
      %p103 = por %p101, %p102
      %p105 = scmp.ne.s32.totalorder %s88, %s104
      %p106 = scmp.eq.s32.totalorder %s17, 0
      %p107 = por %p105, %p106
      %s108 = ssub.s32 %s18, %s30
      %s109 = ssub.s32 %s19, %s26
      %s110 = sor.u32 %s108, %s109
      %p111 = scmp.eq.s32.totalorder %s110, 0
      %s113 = sadd.s32 %s112, 1
      %s114 = scalar_select %p111, %s112, %s113
      %p117 = pneg %p111
      %p118 = scmp.eq.s32.totalorder %s11, 3
      %p119 = por %p117, %p118
      %p120 = scmp.ne.s32.totalorder %s112, %s115
      %p121 = scmp.eq.s32.totalorder %s11, 0
      %p122 = por %p120, %p121
      %p123 = scmp.ne.s32.totalorder %s112, %s115
      %p124 = scmp.eq.s32.totalorder %s16, 3
      %p125 = por %p123, %p124
      %p126 = scmp.ne.s32.totalorder %s115, %s116
      %p127 = scmp.eq.s32.totalorder %s16, 0
      %p128 = por %p126, %p127
      %p129 = scmp.ne.s32.totalorder %s115, %s116
      %p130 = scmp.eq.s32.totalorder %s17, 3
      %p131 = por %p129, %p130
      %p133 = scmp.ne.s32.totalorder %s116, %s132
      %p134 = scmp.eq.s32.totalorder %s17, 0
      %p135 = por %p133, %p134
      %s136 = ssub.s32 %s18, %s30
      %s137 = ssub.s32 %s19, %s26
      %s138 = sor.u32 %s136, %s137
      %p139 = scmp.eq.s32.totalorder %s138, 0
      %s141 = sadd.s32 %s140, 1
      %s142 = scalar_select %p139, %s140, %s141
      %p145 = pneg %p139
      %p146 = scmp.eq.s32.totalorder %s11, 3
      %p147 = por %p145, %p146
      %p148 = scmp.ne.s32.totalorder %s140, %s143
      %p149 = scmp.eq.s32.totalorder %s11, 0
      %p150 = por %p148, %p149
      %p151 = scmp.ne.s32.totalorder %s140, %s143
      %p152 = scmp.eq.s32.totalorder %s16, 3
      %p153 = por %p151, %p152
      %p154 = scmp.ne.s32.totalorder %s143, %s144
      %p155 = scmp.eq.s32.totalorder %s16, 0
      %p156 = por %p154, %p155
      %p157 = scmp.ne.s32.totalorder %s143, %s144
      %p158 = scmp.eq.s32.totalorder %s17, 3
      %p159 = por %p157, %p158
      %p161 = scmp.ne.s32.totalorder %s144, %s160
      %p162 = scmp.eq.s32.totalorder %s17, 0
      %p163 = por %p161, %p162
      %p164 = scmp.le.s32.totalorder 1, %s11
      %p165 = scmp.lt.s32.totalorder %s11, 5
      %p166 = pnand %p164, %p165
      %p167 = pneg %p166
      // Predicated region
      $region9: #{tpu_custom_call.1} parent=5 // pred_check
        _
      $region10: #{tpu_custom_call.1} parent=5 // pred_check_branch
        %169 = sbr.rel (%p166) target = $region12
      $region11: #{tpu_custom_call.1} parent=5 // pred_region
        %s170 = ssub.s32 %s11, 1
        // Predicated region
        $region13: #{tpu_custom_call.1} parent=11 // pred_check
          %p171 = pneg %p72
        $region14: #{tpu_custom_call.1} parent=11 // pred_check_branch
          %173 = sbr.rel (%p171) target = $region16
        $region15: #{tpu_custom_call.1} parent=11 // pred_region
          _
        $region16: #{tpu_custom_call.1} parent=11 // pred_fallthru
          _
      $region12: #{tpu_custom_call.1} parent=5 // pred_fallthru
        _
      %p174 = scmp.lt.s32.totalorder %s11, 4
      // Predicated region
      $region17: #{tpu_custom_call.1} parent=5 // pred_check
        %p175 = pneg %p174
      $region18: #{tpu_custom_call.1} parent=5 // pred_check_branch
        %177 = sbr.rel (%p175) target = $region20
      $region19: #{tpu_custom_call.1} parent=5 // pred_region
        // Predicated region
        $region21: #{tpu_custom_call.1} parent=19 // pred_check
          %p178 = pneg %p45
        $region22: #{tpu_custom_call.1} parent=19 // pred_check_branch
          %180 = sbr.rel (%p178) target = $region24
        $region23: #{tpu_custom_call.1} parent=19 // pred_region
          %s181 = smul.u32 8, %s19
          %p182 = scmp.lt.s32.totalorder %s18, 1
          %s183 = scalar_select %p182, %s18, 1
          %p184 = scmp.lt.s32.totalorder %s181, 15
          %s185 = scalar_select %p184, %s181, 15
          %s186 = smul.addr %s183, 16
          %s187 = sadd.s32 %s185, %s186
          %s188 = smul.addr %s187, 8
          %s189 = scalar_lea.vmem %s0, %s188
          %s190 = smul.u32 8, %s19
        $region24: #{tpu_custom_call.1} parent=19 // pred_fallthru
          _
      $region20: #{tpu_custom_call.1} parent=5 // pred_fallthru
        _
      %p191 = scmp.le.s32.totalorder 1, %s11
      %p192 = scmp.lt.s32.totalorder %s11, 5
      %p193 = pnand %p191, %p192
      %p194 = pneg %p193
      // Predicated region
      $region25: #{tpu_custom_call.1} parent=5 // pred_check
        _
      $region26: #{tpu_custom_call.1} parent=5 // pred_check_branch
        %196 = sbr.rel (%p193) target = $region28
      $region27: #{tpu_custom_call.1} parent=5 // pred_region
        %s197 = ssub.s32 %s11, 1
        %s198 = smul.u32 8, %s21
        %p199 = scmp.lt.s32.totalorder %s20, 1
        %s200 = scalar_select %p199, %s20, 1
        %p201 = scmp.lt.s32.totalorder %s198, 15
        %s202 = scalar_select %p201, %s198, 15
        %s203 = smul.addr %s200, 16
        %s204 = sadd.s32 %s202, %s203
        %s205 = smul.addr %s204, 8
        %s206 = scalar_lea.vmem %s0, %s205
        %p207 = pneg %p51
        %p208 = pneg %p48
        %p209 = pneg %p72
        %p210 = pneg %p69
        %p211 = pneg %p100
        %p212 = pneg %p97
        %s213 = sand.u32 %s87, 1
        %s214 = sand.u32 %s87, 1
        %s215 = smul.addr %s214, 256
        %s216 = scalar_lea.vmem [#allocation2], %s215
        %p217 = pneg %p128
        %p218 = pneg %p125
        %s219 = sand.u32 %s115, 1
        %s220 = sand.u32 %s115, 1
        %s221 = smul.addr %s220, 256
        %s222 = scalar_lea.vmem [#allocation3], %s221
        %p223 = pneg %p156
        %p224 = pneg %p153
        %s225 = sand.u32 %s143, 1
        %s226 = sand.u32 %s143, 1
        %s227 = smul.addr %s226, 256
        %s228 = scalar_lea.vmem [#allocation4], %s227
        %s229 = smul.u32 8, %s21
        %p230 = scmp.lt.s32.totalorder %s20, 1
        %s231 = scalar_select %p230, %s20, 1
        %p232 = scmp.lt.s32.totalorder %s229, 15
        %s233 = scalar_select %p232, %s229, 15
        %s234 = smul.addr %s231, 16
        %s235 = sadd.s32 %s233, %s234
        %s236 = smul.addr %s235, 8
        %s237 = scalar_lea.vmem %s0, %s236
        %s238 = smul.u32 8, %s21
        %s239 = smul.u32 8, %s21
        %s240 = smul.u32 8, %s21
        %s241 = smul.u32 8, %s21
        %v242 = vld [vmem:[%s237] sm:$0xff]
        %v243 = vld [vmem:[%s237 + $0x8] sm:$0xff]
        %v244 = vld [vmem:[%s237 + $0x10] sm:$0xff]
        %v245 = vld [vmem:[%s237 + $0x18] sm:$0xff]
        %v246 = vld [vmem:[%s237 + $0x20] sm:$0xff]
        %v247 = vld [vmem:[%s237 + $0x28] sm:$0xff]
        %v248 = vld [vmem:[%s237 + $0x30] sm:$0xff]
        %v249 = vld [vmem:[%s237 + $0x38] sm:$0xff]
        %v250 = vld [vmem:[%s1] sm:$0xff]
        %v251 = vld [vmem:[%s1 + $0x8] sm:$0xff]
        %v252 = vld [vmem:[%s1 + $0x10] sm:$0xff]
        %v253 = vld [vmem:[%s1 + $0x18] sm:$0xff]
        %v254 = vld [vmem:[%s1 + $0x20] sm:$0xff]
        %v255 = vld [vmem:[%s1 + $0x28] sm:$0xff]
        %v256 = vld [vmem:[%s1 + $0x30] sm:$0xff]
        %v257 = vld [vmem:[%s1 + $0x38] sm:$0xff]
        %v258 = vld [vmem:[%s1 + $0x40] sm:$0xff]
        %v259 = vld [vmem:[%s1 + $0x48] sm:$0xff]
        %v260 = vld [vmem:[%s1 + $0x50] sm:$0xff]
        %v261 = vld [vmem:[%s1 + $0x58] sm:$0xff]
        %v262 = vld [vmem:[%s1 + $0x60] sm:$0xff]
        %v263 = vld [vmem:[%s1 + $0x68] sm:$0xff]
        %v264 = vld [vmem:[%s1 + $0x70] sm:$0xff]
        %v265 = vld [vmem:[%s1 + $0x78] sm:$0xff]
        %v266 = vld [vmem:[%s1 + $0x80] sm:$0xff]
        %v267 = vld [vmem:[%s1 + $0x88] sm:$0xff]
        %v268 = vld [vmem:[%s1 + $0x90] sm:$0xff]
        %v269 = vld [vmem:[%s1 + $0x98] sm:$0xff]
        %v270 = vld [vmem:[%s1 + $0xa0] sm:$0xff]
        %v271 = vld [vmem:[%s1 + $0xa8] sm:$0xff]
        %v272 = vld [vmem:[%s1 + $0xb0] sm:$0xff]
        %v273 = vld [vmem:[%s1 + $0xb8] sm:$0xff]
        %vm274 = vcmask 523264
        %v276 = vsel %vm274, %v242, 0
        %v279 = vsel %vm274, %v243, 0
        %v282 = vsel %vm274, %v244, 0
        %v285 = vsel %vm274, %v245, 0
        %v288 = vsel %vm274, %v246, 0
        %v291 = vsel %vm274, %v247, 0
        %v294 = vsel %vm274, %v248, 0
        %v297 = vsel %vm274, %v249, 0
        %v300 = vsel %vm274, %v250, 0
        %v303 = vsel %vm274, %v251, 0
        %v306 = vsel %vm274, %v252, 0
        %v309 = vsel %vm274, %v253, 0
        %v312 = vsel %vm274, %v254, 0
        %v315 = vsel %vm274, %v255, 0
        %v318 = vsel %vm274, %v256, 0
        %v321 = vsel %vm274, %v257, 0
        %v324 = vsel %vm274, %v258, 0
        %v327 = vsel %vm274, %v259, 0
        %v330 = vsel %vm274, %v260, 0
        %v333 = vsel %vm274, %v261, 0
        %v336 = vsel %vm274, %v262, 0
        %v339 = vsel %vm274, %v263, 0
        %v342 = vsel %vm274, %v264, 0
        %v345 = vsel %vm274, %v265, 0
        %v348 = vsel %vm274, %v266, 0
        %v351 = vsel %vm274, %v267, 0
        %v354 = vsel %vm274, %v268, 0
        %v357 = vsel %vm274, %v269, 0
        %v360 = vsel %vm274, %v270, 0
        %v363 = vsel %vm274, %v271, 0
        %v366 = vsel %vm274, %v272, 0
        %v369 = vsel %vm274, %v273, 0
        %371 = vmatprep.subr.mxu0 0.0
        %372 = vmatpush1.xpose.msra.mxu0 %v300
        %373 = vmatprep.subr.mxu0 0.0
        %374 = vmatpush1.xpose.msra.mxu0 %v303
        %375 = vmatprep.subr.mxu0 0.0
        %376 = vmatpush1.xpose.msra.mxu0 %v306
        %377 = vmatprep.subr.mxu0 0.0
        %378 = vmatpush1.xpose.msra.mxu0 %v309
        %379 = vmatprep.subr.mxu0 0.0
        %380 = vmatpush1.xpose.msra.mxu0 %v312
        %381 = vmatprep.subr.mxu0 0.0
        %382 = vmatpush1.xpose.msra.mxu0 %v315
        %383 = vmatprep.subr.mxu0 0.0
        %384 = vmatpush1.xpose.msra.mxu0 %v318
        %385 = vmatprep.subr.mxu0 0.0
        %386 = vmatpush1.xpose.msra.mxu0 %v321
        %387 = vmatprep.subr.mxu0 0.0
        %388 = vmatpush1.xpose.msra.mxu0 %v324
        %389 = vmatprep.subr.mxu0 0.0
        %390 = vmatpush1.xpose.msra.mxu0 %v327
        %391 = vmatprep.subr.mxu0 0.0
        %392 = vmatpush1.xpose.msra.mxu0 %v330
        %393 = vmatprep.subr.mxu0 0.0
        %394 = vmatpush1.xpose.msra.mxu0 %v333
        %395 = vmatprep.subr.mxu0 0.0
        %396 = vmatpush1.xpose.msra.mxu0 %v336
        %397 = vmatprep.subr.mxu0 0.0
        %398 = vmatpush1.xpose.msra.mxu0 %v339
        %399 = vmatprep.subr.mxu0 0.0
        %400 = vmatpush1.xpose.msra.mxu0 %v342
        %401 = vmatprep.subr.mxu0 0.0
        %402 = vmatpush1.xpose.msra.mxu0 %v345
        %403 = vmatprep.subr.mxu0 0.0
        %404 = vmatpush1.xpose.msra.mxu0 %v348
        %405 = vmatprep.subr.mxu0 0.0
        %406 = vmatpush1.xpose.msra.mxu0 %v351
        %407 = vmatprep.subr.mxu0 0.0
        %408 = vmatpush1.xpose.msra.mxu0 %v354
        %409 = vmatprep.subr.mxu0 0.0
        %410 = vmatpush1.xpose.msra.mxu0 %v357
        %411 = vmatprep.subr.mxu0 0.0
        %412 = vmatpush1.xpose.msra.mxu0 %v360
        %413 = vmatprep.subr.mxu0 0.0
        %414 = vmatpush1.xpose.msra.mxu0 %v363
        %415 = vmatprep.subr.mxu0 0.0
        %416 = vmatpush1.xpose.msra.mxu0 %v366
        %417 = vmatprep.subr.mxu0 0.0
        %418 = vmatpush1.xpose.msra.mxu0 %v369
        %419 = vmatprep.subr.mxu0 0.0
        %420 = vmatpush1.xpose.msra.mxu0 0.0
        %421 = vmatprep.subr.mxu0 0.0
        %422 = vmatpush1.xpose.msra.mxu0 0.0
        %423 = vmatprep.subr.mxu0 0.0
        %424 = vmatpush1.xpose.msra.mxu0 0.0
        %425 = vmatprep.subr.mxu0 0.0
        %426 = vmatpush1.xpose.msra.mxu0 0.0
        %427 = vmatprep.subr.mxu0 0.0
        %428 = vmatpush1.xpose.msra.mxu0 0.0
        %429 = vmatprep.subr.mxu0 0.0
        %430 = vmatpush1.xpose.msra.mxu0 0.0
        %431 = vmatprep.subr.mxu0 0.0
        %432 = vmatpush1.xpose.msra.mxu0 0.0
        %433 = vmatprep.subr.mxu0 0.0
        %434 = vmatpush1.xpose.msra.mxu0 0.0
        %435 = vmatprep.mubr.f32.mxu0 0.0
        %436 = vmatmul.mubr.f32.gmra.mrb[0].mxu0 %v276
        %v437 = vpop.f32.mrb[0].mxu0
        %v438 = vadd.f32 0.0, %v437
        %v439 = vpop.f32.mrb[0].mxu0
        %v440 = vadd.f32 0.0, %v439
        %441 = vmatprep.mubr.f32.mxu0 0.0
        %442 = vmatmul.mubr.f32.gmra.mrb[0].mxu0 %v279
        %v443 = vpop.f32.mrb[0].mxu0
        %v444 = vadd.f32 0.0, %v443
        %v445 = vpop.f32.mrb[0].mxu0
        %v446 = vadd.f32 0.0, %v445
        %447 = vmatprep.mubr.f32.mxu0 0.0
        %448 = vmatmul.mubr.f32.gmra.mrb[0].mxu0 %v282
        %v449 = vpop.f32.mrb[0].mxu0
        %v450 = vadd.f32 0.0, %v449
        %v451 = vpop.f32.mrb[0].mxu0
        %v452 = vadd.f32 0.0, %v451
        %453 = vmatprep.mubr.f32.mxu0 0.0
        %454 = vmatmul.mubr.f32.gmra.mrb[0].mxu0 %v285
        %v455 = vpop.f32.mrb[0].mxu0
        %v456 = vadd.f32 0.0, %v455
        %v457 = vpop.f32.mrb[0].mxu0
        %v458 = vadd.f32 0.0, %v457
        %459 = vmatprep.mubr.f32.mxu0 0.0
        %460 = vmatmul.mubr.f32.gmra.mrb[0].mxu0 %v288
        %v461 = vpop.f32.mrb[0].mxu0
        %v462 = vadd.f32 0.0, %v461
        %v463 = vpop.f32.mrb[0].mxu0
        %v464 = vadd.f32 0.0, %v463
        %465 = vmatprep.mubr.f32.mxu0 0.0
        %466 = vmatmul.mubr.f32.gmra.mrb[0].mxu0 %v291
        %v467 = vpop.f32.mrb[0].mxu0
        %v468 = vadd.f32 0.0, %v467
        %v469 = vpop.f32.mrb[0].mxu0
        %v470 = vadd.f32 0.0, %v469
        %471 = vmatprep.mubr.f32.mxu0 0.0
        %472 = vmatmul.mubr.f32.gmra.mrb[0].mxu0 %v294
        %v473 = vpop.f32.mrb[0].mxu0
        %v474 = vadd.f32 0.0, %v473
        %v475 = vpop.f32.mrb[0].mxu0
        %v476 = vadd.f32 0.0, %v475
        %477 = vmatprep.mubr.f32.mxu0 0.0
        %478 = vmatmul.mubr.f32.gmra.mrb[0].mxu0 %v297
        %v479 = vpop.f32.mrb[0].mxu0
        %v480 = vadd.f32 0.0, %v479
        %v481 = vpop.f32.mrb[0].mxu0
        %v482 = vadd.f32 0.0, %v481
        %483 = vdwg.mxu0
        %vm484 = vcmask 130048
        %485 = vst.msk [vmem:[%s216] sm:$0xff] %vm484, %v438
        %486 = vst.msk [vmem:[%s216 + $0x8] sm:$0xff] %vm484, %v444
        %487 = vst.msk [vmem:[%s216 + $0x10] sm:$0xff] %vm484, %v450
        %488 = vst.msk [vmem:[%s216 + $0x18] sm:$0xff] %vm484, %v456
        %489 = vst.msk [vmem:[%s216 + $0x20] sm:$0xff] %vm484, %v462
        %490 = vst.msk [vmem:[%s216 + $0x28] sm:$0xff] %vm484, %v468
        %491 = vst.msk [vmem:[%s216 + $0x30] sm:$0xff] %vm484, %v474
        %492 = vst.msk [vmem:[%s216 + $0x38] sm:$0xff] %vm484, %v480
        %501 = vrot.lane.b32.xlu0 %v438, 64
        %v502 = vpop.permute.xlu0 %501
        %503 = vrot.lane.b32.xlu0 %v444, 64
        %v504 = vpop.permute.xlu0 %503
        %505 = vrot.lane.b32.xlu0 %v450, 64
        %v506 = vpop.permute.xlu0 %505
        %507 = vrot.lane.b32.xlu0 %v456, 64
        %v508 = vpop.permute.xlu0 %507
        %509 = vrot.lane.b32.xlu0 %v462, 64
        %v510 = vpop.permute.xlu0 %509
        %511 = vrot.lane.b32.xlu0 %v468, 64
        %v512 = vpop.permute.xlu0 %511
        %513 = vrot.lane.b32.xlu0 %v474, 64
        %v514 = vpop.permute.xlu0 %513
        %515 = vrot.lane.b32.xlu0 %v480, 64
        %v516 = vpop.permute.xlu0 %515
        %525 = vst.msk [vmem:[%s222] sm:$0xff] %vm484, %v502
        %526 = vst.msk [vmem:[%s222 + $0x8] sm:$0xff] %vm484, %v504
        %527 = vst.msk [vmem:[%s222 + $0x10] sm:$0xff] %vm484, %v506
        %528 = vst.msk [vmem:[%s222 + $0x18] sm:$0xff] %vm484, %v508
        %529 = vst.msk [vmem:[%s222 + $0x20] sm:$0xff] %vm484, %v510
        %530 = vst.msk [vmem:[%s222 + $0x28] sm:$0xff] %vm484, %v512
        %531 = vst.msk [vmem:[%s222 + $0x30] sm:$0xff] %vm484, %v514
        %532 = vst.msk [vmem:[%s222 + $0x38] sm:$0xff] %vm484, %v516
        %533 = vst.msk [vmem:[%s228] sm:$0xff] %vm484, %v440
        %534 = vst.msk [vmem:[%s228 + $0x8] sm:$0xff] %vm484, %v446
        %535 = vst.msk [vmem:[%s228 + $0x10] sm:$0xff] %vm484, %v452
        %536 = vst.msk [vmem:[%s228 + $0x18] sm:$0xff] %vm484, %v458
        %537 = vst.msk [vmem:[%s228 + $0x20] sm:$0xff] %vm484, %v464
        %538 = vst.msk [vmem:[%s228 + $0x28] sm:$0xff] %vm484, %v470
        %539 = vst.msk [vmem:[%s228 + $0x30] sm:$0xff] %vm484, %v476
        %540 = vst.msk [vmem:[%s228 + $0x38] sm:$0xff] %vm484, %v482
        %541 = vrot.lane.b32.xlu0 %v438, 112
        %v542 = vpop.permute.xlu0 %541
        %543 = vrot.lane.b32.xlu0 %v444, 112
        %v544 = vpop.permute.xlu0 %543
        %545 = vrot.lane.b32.xlu0 %v450, 112
        %v546 = vpop.permute.xlu0 %545
        %547 = vrot.lane.b32.xlu0 %v456, 112
        %v548 = vpop.permute.xlu0 %547
        %549 = vrot.lane.b32.xlu0 %v462, 112
        %v550 = vpop.permute.xlu0 %549
        %551 = vrot.lane.b32.xlu0 %v468, 112
        %v552 = vpop.permute.xlu0 %551
        %553 = vrot.lane.b32.xlu0 %v474, 112
        %v554 = vpop.permute.xlu0 %553
        %555 = vrot.lane.b32.xlu0 %v480, 112
        %v556 = vpop.permute.xlu0 %555
        %s565 = scalar_lea.vmem %s216, 64 [#allocation2]
        %566 = vst.msk [vmem:[%s565] sm:$0xff] %vm484, %v542
        %567 = vst.msk [vmem:[%s565 + $0x8] sm:$0xff] %vm484, %v544
        %568 = vst.msk [vmem:[%s565 + $0x10] sm:$0xff] %vm484, %v546
        %569 = vst.msk [vmem:[%s565 + $0x18] sm:$0xff] %vm484, %v548
        %570 = vst.msk [vmem:[%s565 + $0x20] sm:$0xff] %vm484, %v550
        %571 = vst.msk [vmem:[%s565 + $0x28] sm:$0xff] %vm484, %v552
        %572 = vst.msk [vmem:[%s565 + $0x30] sm:$0xff] %vm484, %v554
        %573 = vst.msk [vmem:[%s565 + $0x38] sm:$0xff] %vm484, %v556
        %574 = vrot.lane.b32.xlu0 %v438, 48
        %v575 = vpop.permute.xlu0 %574
        %576 = vrot.lane.b32.xlu0 %v444, 48
        %v577 = vpop.permute.xlu0 %576
        %578 = vrot.lane.b32.xlu0 %v450, 48
        %v579 = vpop.permute.xlu0 %578
        %580 = vrot.lane.b32.xlu0 %v456, 48
        %v581 = vpop.permute.xlu0 %580
        %582 = vrot.lane.b32.xlu0 %v462, 48
        %v583 = vpop.permute.xlu0 %582
        %584 = vrot.lane.b32.xlu0 %v468, 48
        %v585 = vpop.permute.xlu0 %584
        %586 = vrot.lane.b32.xlu0 %v474, 48
        %v587 = vpop.permute.xlu0 %586
        %588 = vrot.lane.b32.xlu0 %v480, 48
        %v589 = vpop.permute.xlu0 %588
        %s598 = scalar_lea.vmem %s222, 64 [#allocation3]
        %599 = vst.msk [vmem:[%s598] sm:$0xff] %vm484, %v575
        %600 = vst.msk [vmem:[%s598 + $0x8] sm:$0xff] %vm484, %v577
        %601 = vst.msk [vmem:[%s598 + $0x10] sm:$0xff] %vm484, %v579
        %602 = vst.msk [vmem:[%s598 + $0x18] sm:$0xff] %vm484, %v581
        %603 = vst.msk [vmem:[%s598 + $0x20] sm:$0xff] %vm484, %v583
        %604 = vst.msk [vmem:[%s598 + $0x28] sm:$0xff] %vm484, %v585
        %605 = vst.msk [vmem:[%s598 + $0x30] sm:$0xff] %vm484, %v587
        %606 = vst.msk [vmem:[%s598 + $0x38] sm:$0xff] %vm484, %v589
        %615 = vrot.lane.b32.xlu0 %v440, 112
        %v616 = vpop.permute.xlu0 %615
        %617 = vrot.lane.b32.xlu0 %v446, 112
        %v618 = vpop.permute.xlu0 %617
        %619 = vrot.lane.b32.xlu0 %v452, 112
        %v620 = vpop.permute.xlu0 %619
        %621 = vrot.lane.b32.xlu0 %v458, 112
        %v622 = vpop.permute.xlu0 %621
        %623 = vrot.lane.b32.xlu0 %v464, 112
        %v624 = vpop.permute.xlu0 %623
        %625 = vrot.lane.b32.xlu0 %v470, 112
        %v626 = vpop.permute.xlu0 %625
        %627 = vrot.lane.b32.xlu0 %v476, 112
        %v628 = vpop.permute.xlu0 %627
        %629 = vrot.lane.b32.xlu0 %v482, 112
        %v630 = vpop.permute.xlu0 %629
        %s639 = scalar_lea.vmem %s228, 64 [#allocation4]
        %640 = vst.msk [vmem:[%s639] sm:$0xff] %vm484, %v616
        %641 = vst.msk [vmem:[%s639 + $0x8] sm:$0xff] %vm484, %v618
        %642 = vst.msk [vmem:[%s639 + $0x10] sm:$0xff] %vm484, %v620
        %643 = vst.msk [vmem:[%s639 + $0x18] sm:$0xff] %vm484, %v622
        %644 = vst.msk [vmem:[%s639 + $0x20] sm:$0xff] %vm484, %v624
        %645 = vst.msk [vmem:[%s639 + $0x28] sm:$0xff] %vm484, %v626
        %646 = vst.msk [vmem:[%s639 + $0x30] sm:$0xff] %vm484, %v628
        %647 = vst.msk [vmem:[%s639 + $0x38] sm:$0xff] %vm484, %v630
        %648 = vrot.lane.b32.xlu0 %v438, 96
        %v649 = vpop.permute.xlu0 %648
        %650 = vrot.lane.b32.xlu0 %v444, 96
        %v651 = vpop.permute.xlu0 %650
        %652 = vrot.lane.b32.xlu0 %v450, 96
        %v653 = vpop.permute.xlu0 %652
        %654 = vrot.lane.b32.xlu0 %v456, 96
        %v655 = vpop.permute.xlu0 %654
        %656 = vrot.lane.b32.xlu0 %v462, 96
        %v657 = vpop.permute.xlu0 %656
        %658 = vrot.lane.b32.xlu0 %v468, 96
        %v659 = vpop.permute.xlu0 %658
        %660 = vrot.lane.b32.xlu0 %v474, 96
        %v661 = vpop.permute.xlu0 %660
        %662 = vrot.lane.b32.xlu0 %v480, 96
        %v663 = vpop.permute.xlu0 %662
        %s672 = scalar_lea.vmem %s216, 128 [#allocation2]
        %673 = vst.msk [vmem:[%s672] sm:$0xff] %vm484, %v649
        %674 = vst.msk [vmem:[%s672 + $0x8] sm:$0xff] %vm484, %v651
        %675 = vst.msk [vmem:[%s672 + $0x10] sm:$0xff] %vm484, %v653
        %676 = vst.msk [vmem:[%s672 + $0x18] sm:$0xff] %vm484, %v655
        %677 = vst.msk [vmem:[%s672 + $0x20] sm:$0xff] %vm484, %v657
        %678 = vst.msk [vmem:[%s672 + $0x28] sm:$0xff] %vm484, %v659
        %679 = vst.msk [vmem:[%s672 + $0x30] sm:$0xff] %vm484, %v661
        %680 = vst.msk [vmem:[%s672 + $0x38] sm:$0xff] %vm484, %v663
        %681 = vrot.lane.b32.xlu0 %v438, 32
        %v682 = vpop.permute.xlu0 %681
        %683 = vrot.lane.b32.xlu0 %v444, 32
        %v684 = vpop.permute.xlu0 %683
        %685 = vrot.lane.b32.xlu0 %v450, 32
        %v686 = vpop.permute.xlu0 %685
        %687 = vrot.lane.b32.xlu0 %v456, 32
        %v688 = vpop.permute.xlu0 %687
        %689 = vrot.lane.b32.xlu0 %v462, 32
        %v690 = vpop.permute.xlu0 %689
        %691 = vrot.lane.b32.xlu0 %v468, 32
        %v692 = vpop.permute.xlu0 %691
        %693 = vrot.lane.b32.xlu0 %v474, 32
        %v694 = vpop.permute.xlu0 %693
        %695 = vrot.lane.b32.xlu0 %v480, 32
        %v696 = vpop.permute.xlu0 %695
        %s705 = scalar_lea.vmem %s222, 128 [#allocation3]
        %706 = vst.msk [vmem:[%s705] sm:$0xff] %vm484, %v682
        %707 = vst.msk [vmem:[%s705 + $0x8] sm:$0xff] %vm484, %v684
        %708 = vst.msk [vmem:[%s705 + $0x10] sm:$0xff] %vm484, %v686
        %709 = vst.msk [vmem:[%s705 + $0x18] sm:$0xff] %vm484, %v688
        %710 = vst.msk [vmem:[%s705 + $0x20] sm:$0xff] %vm484, %v690
        %711 = vst.msk [vmem:[%s705 + $0x28] sm:$0xff] %vm484, %v692
        %712 = vst.msk [vmem:[%s705 + $0x30] sm:$0xff] %vm484, %v694
        %713 = vst.msk [vmem:[%s705 + $0x38] sm:$0xff] %vm484, %v696
        %714 = vrot.lane.b32.xlu0 %v440, 96
        %v715 = vpop.permute.xlu0 %714
        %716 = vrot.lane.b32.xlu0 %v446, 96
        %v717 = vpop.permute.xlu0 %716
        %718 = vrot.lane.b32.xlu0 %v452, 96
        %v719 = vpop.permute.xlu0 %718
        %720 = vrot.lane.b32.xlu0 %v458, 96
        %v721 = vpop.permute.xlu0 %720
        %722 = vrot.lane.b32.xlu0 %v464, 96
        %v723 = vpop.permute.xlu0 %722
        %724 = vrot.lane.b32.xlu0 %v470, 96
        %v725 = vpop.permute.xlu0 %724
        %726 = vrot.lane.b32.xlu0 %v476, 96
        %v727 = vpop.permute.xlu0 %726
        %728 = vrot.lane.b32.xlu0 %v482, 96
        %v729 = vpop.permute.xlu0 %728
        %s738 = scalar_lea.vmem %s228, 128 [#allocation4]
        %739 = vst.msk [vmem:[%s738] sm:$0xff] %vm484, %v715
        %740 = vst.msk [vmem:[%s738 + $0x8] sm:$0xff] %vm484, %v717
        %741 = vst.msk [vmem:[%s738 + $0x10] sm:$0xff] %vm484, %v719
        %742 = vst.msk [vmem:[%s738 + $0x18] sm:$0xff] %vm484, %v721
        %743 = vst.msk [vmem:[%s738 + $0x20] sm:$0xff] %vm484, %v723
        %744 = vst.msk [vmem:[%s738 + $0x28] sm:$0xff] %vm484, %v725
        %745 = vst.msk [vmem:[%s738 + $0x30] sm:$0xff] %vm484, %v727
        %746 = vst.msk [vmem:[%s738 + $0x38] sm:$0xff] %vm484, %v729
        %747 = vrot.lane.b32.xlu0 %v438, 80
        %v748 = vpop.permute.xlu0 %747
        %749 = vrot.lane.b32.xlu0 %v444, 80
        %v750 = vpop.permute.xlu0 %749
        %751 = vrot.lane.b32.xlu0 %v450, 80
        %v752 = vpop.permute.xlu0 %751
        %753 = vrot.lane.b32.xlu0 %v456, 80
        %v754 = vpop.permute.xlu0 %753
        %755 = vrot.lane.b32.xlu0 %v462, 80
        %v756 = vpop.permute.xlu0 %755
        %757 = vrot.lane.b32.xlu0 %v468, 80
        %v758 = vpop.permute.xlu0 %757
        %759 = vrot.lane.b32.xlu0 %v474, 80
        %v760 = vpop.permute.xlu0 %759
        %761 = vrot.lane.b32.xlu0 %v480, 80
        %v762 = vpop.permute.xlu0 %761
        %s771 = scalar_lea.vmem %s216, 192 [#allocation2]
        %772 = vst.msk [vmem:[%s771] sm:$0xff] %vm484, %v748
        %773 = vst.msk [vmem:[%s771 + $0x8] sm:$0xff] %vm484, %v750
        %774 = vst.msk [vmem:[%s771 + $0x10] sm:$0xff] %vm484, %v752
        %775 = vst.msk [vmem:[%s771 + $0x18] sm:$0xff] %vm484, %v754
        %776 = vst.msk [vmem:[%s771 + $0x20] sm:$0xff] %vm484, %v756
        %777 = vst.msk [vmem:[%s771 + $0x28] sm:$0xff] %vm484, %v758
        %778 = vst.msk [vmem:[%s771 + $0x30] sm:$0xff] %vm484, %v760
        %779 = vst.msk [vmem:[%s771 + $0x38] sm:$0xff] %vm484, %v762
        %780 = vrot.lane.b32.xlu0 %v438, 16
        %v781 = vpop.permute.xlu0 %780
        %782 = vrot.lane.b32.xlu0 %v444, 16
        %v783 = vpop.permute.xlu0 %782
        %784 = vrot.lane.b32.xlu0 %v450, 16
        %v785 = vpop.permute.xlu0 %784
        %786 = vrot.lane.b32.xlu0 %v456, 16
        %v787 = vpop.permute.xlu0 %786
        %788 = vrot.lane.b32.xlu0 %v462, 16
        %v789 = vpop.permute.xlu0 %788
        %790 = vrot.lane.b32.xlu0 %v468, 16
        %v791 = vpop.permute.xlu0 %790
        %792 = vrot.lane.b32.xlu0 %v474, 16
        %v793 = vpop.permute.xlu0 %792
        %794 = vrot.lane.b32.xlu0 %v480, 16
        %v795 = vpop.permute.xlu0 %794
        %s804 = scalar_lea.vmem %s222, 192 [#allocation3]
        %805 = vst.msk [vmem:[%s804] sm:$0xff] %vm484, %v781
        %806 = vst.msk [vmem:[%s804 + $0x8] sm:$0xff] %vm484, %v783
        %807 = vst.msk [vmem:[%s804 + $0x10] sm:$0xff] %vm484, %v785
        %808 = vst.msk [vmem:[%s804 + $0x18] sm:$0xff] %vm484, %v787
        %809 = vst.msk [vmem:[%s804 + $0x20] sm:$0xff] %vm484, %v789
        %810 = vst.msk [vmem:[%s804 + $0x28] sm:$0xff] %vm484, %v791
        %811 = vst.msk [vmem:[%s804 + $0x30] sm:$0xff] %vm484, %v793
        %812 = vst.msk [vmem:[%s804 + $0x38] sm:$0xff] %vm484, %v795
        %813 = vrot.lane.b32.xlu0 %v440, 80
        %v814 = vpop.permute.xlu0 %813
        %815 = vrot.lane.b32.xlu0 %v446, 80
        %v816 = vpop.permute.xlu0 %815
        %817 = vrot.lane.b32.xlu0 %v452, 80
        %v818 = vpop.permute.xlu0 %817
        %819 = vrot.lane.b32.xlu0 %v458, 80
        %v820 = vpop.permute.xlu0 %819
        %821 = vrot.lane.b32.xlu0 %v464, 80
        %v822 = vpop.permute.xlu0 %821
        %823 = vrot.lane.b32.xlu0 %v470, 80
        %v824 = vpop.permute.xlu0 %823
        %825 = vrot.lane.b32.xlu0 %v476, 80
        %v826 = vpop.permute.xlu0 %825
        %827 = vrot.lane.b32.xlu0 %v482, 80
        %v828 = vpop.permute.xlu0 %827
        %s837 = scalar_lea.vmem %s228, 192 [#allocation4]
        %838 = vst.msk [vmem:[%s837] sm:$0xff] %vm484, %v814
        %839 = vst.msk [vmem:[%s837 + $0x8] sm:$0xff] %vm484, %v816
        %840 = vst.msk [vmem:[%s837 + $0x10] sm:$0xff] %vm484, %v818
        %841 = vst.msk [vmem:[%s837 + $0x18] sm:$0xff] %vm484, %v820
        %842 = vst.msk [vmem:[%s837 + $0x20] sm:$0xff] %vm484, %v822
        %843 = vst.msk [vmem:[%s837 + $0x28] sm:$0xff] %vm484, %v824
        %844 = vst.msk [vmem:[%s837 + $0x30] sm:$0xff] %vm484, %v826
        %845 = vst.msk [vmem:[%s837 + $0x38] sm:$0xff] %vm484, %v828
        %s846 = sand.u32 %s87, 1
        %s847 = sand.u32 %s87, 1
        %s848 = smul.addr %s847, 256
        %s849 = scalar_lea.vmem [#allocation2], %s848
        %s850 = sand.u32 %s115, 1
        %s851 = sand.u32 %s115, 1
        %s852 = smul.addr %s851, 256
        %s853 = scalar_lea.vmem [#allocation3], %s852
        %s854 = sand.u32 %s143, 1
        %s855 = sand.u32 %s143, 1
        %s856 = smul.addr %s855, 256
        %s857 = scalar_lea.vmem [#allocation4], %s856
        // Predicated region
        $region29: #{tpu_custom_call.1} parent=27 // pred_check
          %p858 = pneg %p97
        $region30: #{tpu_custom_call.1} parent=27 // pred_check_branch
          %860 = sbr.rel (%p858) target = $region32
        $region31: #{tpu_custom_call.1} parent=27 // pred_region
          %s861 = smul.u32 8, %s21
          %s862 = smul.addr %s20, 64
          %s863 = sadd.s32 %s861, %s862
          %s864 = smul.addr %s863, 8
          %s865 = scalar_lea.vmem %s2, %s864
          // Predicated region
          $region33: #{tpu_custom_call.1} parent=31 // pred_check
            _
          $region34: #{tpu_custom_call.1} parent=31 // pred_check_branch
            %867 = sbr.rel (0) target = $region36
          $region35: #{tpu_custom_call.1} parent=31 // pred_region
            // Predicated region
            $region37: #{tpu_custom_call.1} parent=35 // pred_check
              _
            $region38: #{tpu_custom_call.1} parent=35 // pred_check_branch
              %869 = sbr.rel (0) target = $region40
            $region39: #{tpu_custom_call.1} parent=35 // pred_region
              // Predicated region
              $region52: #{tpu_custom_call.1} parent=39 // pred_check
                _
              $region53: #{tpu_custom_call.1} parent=39 // pred_check_branch
                %946 = sbr.rel (0) target = $region55
              $region54: #{tpu_custom_call.1} parent=39 // pred_region
                loop: start=0, step=1, limit=1
                $region56: #{tpu_custom_call.1} parent=54 // loop_pre_header
                  _
                $region57: #{tpu_custom_call.1} parent=54 // loop_header
                  %s948 = sphi 0, %s952
                  %p949 = scmp.ge.s32.totalorder %s948, 1
                  %s953 = sphi %s849, %s849
                  %s954 = sphi %s865, %s865
                $region58: #{tpu_custom_call.1} parent=54 // loop_header_branch
                  %951 = sbr.rel (%p949) target = $region62
                $region59: #{tpu_custom_call.1} parent=54 // loop_body
                  %v955 = vld [vmem:[%s953] sm:$0xff]
                  %956 = vst [vmem:[%s954] sm:$0xff] %v955
                  %v957 = vld [vmem:[%s953 + $0x8] sm:$0xff]
                  %958 = vst [vmem:[%s954 + $0x8] sm:$0xff] %v957
                  %v959 = vld [vmem:[%s953 + $0x10] sm:$0xff]
                  %960 = vst [vmem:[%s954 + $0x10] sm:$0xff] %v959
                  %v961 = vld [vmem:[%s953 + $0x18] sm:$0xff]
                  %962 = vst [vmem:[%s954 + $0x18] sm:$0xff] %v961
                  %v963 = vld [vmem:[%s953 + $0x20] sm:$0xff]
                  %964 = vst [vmem:[%s954 + $0x20] sm:$0xff] %v963
                  %v965 = vld [vmem:[%s953 + $0x28] sm:$0xff]
                  %966 = vst [vmem:[%s954 + $0x28] sm:$0xff] %v965
                  %v967 = vld [vmem:[%s953 + $0x30] sm:$0xff]
                  %968 = vst [vmem:[%s954 + $0x30] sm:$0xff] %v967
                  %v969 = vld [vmem:[%s953 + $0x38] sm:$0xff]
                  %970 = vst [vmem:[%s954 + $0x38] sm:$0xff] %v969
                  %v971 = vld [vmem:[%s953 + $0x40] sm:$0xff]
                  %972 = vst [vmem:[%s954 + $0x80] sm:$0xff] %v971
                  %v973 = vld [vmem:[%s953 + $0x48] sm:$0xff]
                  %974 = vst [vmem:[%s954 + $0x88] sm:$0xff] %v973
                  %v975 = vld [vmem:[%s953 + $0x50] sm:$0xff]
                  %976 = vst [vmem:[%s954 + $0x90] sm:$0xff] %v975
                  %v977 = vld [vmem:[%s953 + $0x58] sm:$0xff]
                  %978 = vst [vmem:[%s954 + $0x98] sm:$0xff] %v977
                  %v979 = vld [vmem:[%s953 + $0x60] sm:$0xff]
                  %980 = vst [vmem:[%s954 + $0xa0] sm:$0xff] %v979
                  %v981 = vld [vmem:[%s953 + $0x68] sm:$0xff]
                  %982 = vst [vmem:[%s954 + $0xa8] sm:$0xff] %v981
                  %v983 = vld [vmem:[%s953 + $0x70] sm:$0xff]
                  %984 = vst [vmem:[%s954 + $0xb0] sm:$0xff] %v983
                  %v985 = vld [vmem:[%s953 + $0x78] sm:$0xff]
                  %986 = vst [vmem:[%s954 + $0xb8] sm:$0xff] %v985
                  %v987 = vld [vmem:[%s953 + $0x80] sm:$0xff]
                  %988 = vst [vmem:[%s954 + $0x100] sm:$0xff] %v987
                  %v989 = vld [vmem:[%s953 + $0x88] sm:$0xff]
                  %990 = vst [vmem:[%s954 + $0x108] sm:$0xff] %v989
                  %v991 = vld [vmem:[%s953 + $0x90] sm:$0xff]
                  %992 = vst [vmem:[%s954 + $0x110] sm:$0xff] %v991
                  %v993 = vld [vmem:[%s953 + $0x98] sm:$0xff]
                  %994 = vst [vmem:[%s954 + $0x118] sm:$0xff] %v993
                  %v995 = vld [vmem:[%s953 + $0xa0] sm:$0xff]
                  %996 = vst [vmem:[%s954 + $0x120] sm:$0xff] %v995
                  %v997 = vld [vmem:[%s953 + $0xa8] sm:$0xff]
                  %998 = vst [vmem:[%s954 + $0x128] sm:$0xff] %v997
                  %v999 = vld [vmem:[%s953 + $0xb0] sm:$0xff]
                  %1000 = vst [vmem:[%s954 + $0x130] sm:$0xff] %v999
                  %v1001 = vld [vmem:[%s953 + $0xb8] sm:$0xff]
                  %1002 = vst [vmem:[%s954 + $0x138] sm:$0xff] %v1001
                  %v1003 = vld [vmem:[%s953 + $0xc0] sm:$0xff]
                  %1004 = vst [vmem:[%s954 + $0x180] sm:$0xff] %v1003
                  %v1005 = vld [vmem:[%s953 + $0xc8] sm:$0xff]
                  %1006 = vst [vmem:[%s954 + $0x188] sm:$0xff] %v1005
                  %v1007 = vld [vmem:[%s953 + $0xd0] sm:$0xff]
                  %1008 = vst [vmem:[%s954 + $0x190] sm:$0xff] %v1007
                  %v1009 = vld [vmem:[%s953 + $0xd8] sm:$0xff]
                  %1010 = vst [vmem:[%s954 + $0x198] sm:$0xff] %v1009
                  %v1011 = vld [vmem:[%s953 + $0xe0] sm:$0xff]
                  %1012 = vst [vmem:[%s954 + $0x1a0] sm:$0xff] %v1011
                  %v1013 = vld [vmem:[%s953 + $0xe8] sm:$0xff]
                  %1014 = vst [vmem:[%s954 + $0x1a8] sm:$0xff] %v1013
                  %v1015 = vld [vmem:[%s953 + $0xf0] sm:$0xff]
                  %1016 = vst [vmem:[%s954 + $0x1b0] sm:$0xff] %v1015
                  %v1017 = vld [vmem:[%s953 + $0xf8] sm:$0xff]
                  %1018 = vst [vmem:[%s954 + $0x1b8] sm:$0xff] %v1017
                $region60: #{tpu_custom_call.1} parent=54 // loop_footer
                  %s952 = sadd.s32 1, %s948
                $region61: #{tpu_custom_call.1} parent=54 // loop_footer_branch
                  %947 = sbr.rel target = $region57
                $region62: #{tpu_custom_call.1} parent=54 // loop_exit
                  _
              $region55: #{tpu_custom_call.1} parent=39 // pred_fallthru
                _
              // Predicated region
              $region63: #{tpu_custom_call.1} parent=39 // pred_check
                _
              $region64: #{tpu_custom_call.1} parent=39 // pred_check_branch
                %1020 = sbr.rel target = $region66
              $region65: #{tpu_custom_call.1} parent=39 // pred_region
                _
              $region66: #{tpu_custom_call.1} parent=39 // pred_fallthru
                _
            $region40: #{tpu_custom_call.1} parent=35 // pred_fallthru
              _
            // Predicated region
            $region41: #{tpu_custom_call.1} parent=35 // pred_check
              _
            $region42: #{tpu_custom_call.1} parent=35 // pred_check_branch
              %871 = sbr.rel target = $region44
            $region43: #{tpu_custom_call.1} parent=35 // pred_region
              loop: start=0, step=1, limit=1
              $region45: #{tpu_custom_call.1} parent=43 // loop_pre_header
                _
              $region46: #{tpu_custom_call.1} parent=43 // loop_header
                %s874 = sphi 0, %s878
                %p875 = scmp.ge.s32.totalorder %s874, 1
                %s879 = sphi %s849, %s849
                %s880 = sphi %s865, %s865
              $region47: #{tpu_custom_call.1} parent=43 // loop_header_branch
                %877 = sbr.rel (%p875) target = $region51
              $region48: #{tpu_custom_call.1} parent=43 // loop_body
                %v881 = vld [vmem:[%s879] sm:$0xff]
                %882 = vst [vmem:[%s880] sm:$0xff] %v881
                %v883 = vld [vmem:[%s879 + $0x8] sm:$0xff]
                %884 = vst [vmem:[%s880 + $0x8] sm:$0xff] %v883
                %v885 = vld [vmem:[%s879 + $0x10] sm:$0xff]
                %886 = vst [vmem:[%s880 + $0x10] sm:$0xff] %v885
                %v887 = vld [vmem:[%s879 + $0x18] sm:$0xff]
                %888 = vst [vmem:[%s880 + $0x18] sm:$0xff] %v887
                %v889 = vld [vmem:[%s879 + $0x20] sm:$0xff]
                %890 = vst [vmem:[%s880 + $0x20] sm:$0xff] %v889
                %v891 = vld [vmem:[%s879 + $0x28] sm:$0xff]
                %892 = vst [vmem:[%s880 + $0x28] sm:$0xff] %v891
                %v893 = vld [vmem:[%s879 + $0x30] sm:$0xff]
                %894 = vst [vmem:[%s880 + $0x30] sm:$0xff] %v893
                %v895 = vld [vmem:[%s879 + $0x38] sm:$0xff]
                %896 = vst [vmem:[%s880 + $0x38] sm:$0xff] %v895
                %v897 = vld [vmem:[%s879 + $0x40] sm:$0xff]
                %898 = vst [vmem:[%s880 + $0x80] sm:$0xff] %v897
                %v899 = vld [vmem:[%s879 + $0x48] sm:$0xff]
                %900 = vst [vmem:[%s880 + $0x88] sm:$0xff] %v899
                %v901 = vld [vmem:[%s879 + $0x50] sm:$0xff]
                %902 = vst [vmem:[%s880 + $0x90] sm:$0xff] %v901
                %v903 = vld [vmem:[%s879 + $0x58] sm:$0xff]
                %904 = vst [vmem:[%s880 + $0x98] sm:$0xff] %v903
                %v905 = vld [vmem:[%s879 + $0x60] sm:$0xff]
                %906 = vst [vmem:[%s880 + $0xa0] sm:$0xff] %v905
                %v907 = vld [vmem:[%s879 + $0x68] sm:$0xff]
                %908 = vst [vmem:[%s880 + $0xa8] sm:$0xff] %v907
                %v909 = vld [vmem:[%s879 + $0x70] sm:$0xff]
                %910 = vst [vmem:[%s880 + $0xb0] sm:$0xff] %v909
                %v911 = vld [vmem:[%s879 + $0x78] sm:$0xff]
                %912 = vst [vmem:[%s880 + $0xb8] sm:$0xff] %v911
                %v913 = vld [vmem:[%s879 + $0x80] sm:$0xff]
                %914 = vst [vmem:[%s880 + $0x100] sm:$0xff] %v913
                %v915 = vld [vmem:[%s879 + $0x88] sm:$0xff]
                %916 = vst [vmem:[%s880 + $0x108] sm:$0xff] %v915
                %v917 = vld [vmem:[%s879 + $0x90] sm:$0xff]
                %918 = vst [vmem:[%s880 + $0x110] sm:$0xff] %v917
                %v919 = vld [vmem:[%s879 + $0x98] sm:$0xff]
                %920 = vst [vmem:[%s880 + $0x118] sm:$0xff] %v919
                %v921 = vld [vmem:[%s879 + $0xa0] sm:$0xff]
                %922 = vst [vmem:[%s880 + $0x120] sm:$0xff] %v921
                %v923 = vld [vmem:[%s879 + $0xa8] sm:$0xff]
                %924 = vst [vmem:[%s880 + $0x128] sm:$0xff] %v923
                %v925 = vld [vmem:[%s879 + $0xb0] sm:$0xff]
                %926 = vst [vmem:[%s880 + $0x130] sm:$0xff] %v925
                %v927 = vld [vmem:[%s879 + $0xb8] sm:$0xff]
                %928 = vst [vmem:[%s880 + $0x138] sm:$0xff] %v927
                %v929 = vld [vmem:[%s879 + $0xc0] sm:$0xff]
                %930 = vst [vmem:[%s880 + $0x180] sm:$0xff] %v929
                %v931 = vld [vmem:[%s879 + $0xc8] sm:$0xff]
                %932 = vst [vmem:[%s880 + $0x188] sm:$0xff] %v931
                %v933 = vld [vmem:[%s879 + $0xd0] sm:$0xff]
                %934 = vst [vmem:[%s880 + $0x190] sm:$0xff] %v933
                %v935 = vld [vmem:[%s879 + $0xd8] sm:$0xff]
                %936 = vst [vmem:[%s880 + $0x198] sm:$0xff] %v935
                %v937 = vld [vmem:[%s879 + $0xe0] sm:$0xff]
                %938 = vst [vmem:[%s880 + $0x1a0] sm:$0xff] %v937
                %v939 = vld [vmem:[%s879 + $0xe8] sm:$0xff]
                %940 = vst [vmem:[%s880 + $0x1a8] sm:$0xff] %v939
                %v941 = vld [vmem:[%s879 + $0xf0] sm:$0xff]
                %942 = vst [vmem:[%s880 + $0x1b0] sm:$0xff] %v941
                %v943 = vld [vmem:[%s879 + $0xf8] sm:$0xff]
                %944 = vst [vmem:[%s880 + $0x1b8] sm:$0xff] %v943
              $region49: #{tpu_custom_call.1} parent=43 // loop_footer
                %s878 = sadd.s32 1, %s874
              $region50: #{tpu_custom_call.1} parent=43 // loop_footer_branch
                %873 = sbr.rel target = $region46
              $region51: #{tpu_custom_call.1} parent=43 // loop_exit
                _
            $region44: #{tpu_custom_call.1} parent=35 // pred_fallthru
              _
          $region36: #{tpu_custom_call.1} parent=31 // pred_fallthru
            _
          %1021 = vnop
        $region32: #{tpu_custom_call.1} parent=27 // pred_fallthru
          _
        // Predicated region
        $region67: #{tpu_custom_call.1} parent=27 // pred_check
          %p1022 = pneg %p125
        $region68: #{tpu_custom_call.1} parent=27 // pred_check_branch
          %1024 = sbr.rel (%p1022) target = $region70
        $region69: #{tpu_custom_call.1} parent=27 // pred_region
          %s1025 = smul.u32 8, %s21
          %s1026 = smul.addr %s20, 64
          %s1027 = sadd.s32 %s1025, %s1026
          %s1028 = smul.addr %s1027, 8
          %s1029 = scalar_lea.vmem %s3, %s1028
          // Predicated region
          $region71: #{tpu_custom_call.1} parent=69 // pred_check
            _
          $region72: #{tpu_custom_call.1} parent=69 // pred_check_branch
            %1031 = sbr.rel (0) target = $region74
          $region73: #{tpu_custom_call.1} parent=69 // pred_region
            // Predicated region
            $region75: #{tpu_custom_call.1} parent=73 // pred_check
              _
            $region76: #{tpu_custom_call.1} parent=73 // pred_check_branch
              %1033 = sbr.rel (0) target = $region78
            $region77: #{tpu_custom_call.1} parent=73 // pred_region
              // Predicated region
              $region90: #{tpu_custom_call.1} parent=77 // pred_check
                _
              $region91: #{tpu_custom_call.1} parent=77 // pred_check_branch
                %1110 = sbr.rel (0) target = $region93
              $region92: #{tpu_custom_call.1} parent=77 // pred_region
                loop: start=0, step=1, limit=1
                $region94: #{tpu_custom_call.1} parent=92 // loop_pre_header
                  _
                $region95: #{tpu_custom_call.1} parent=92 // loop_header
                  %s1112 = sphi 0, %s1116
                  %p1113 = scmp.ge.s32.totalorder %s1112, 1
                  %s1117 = sphi %s853, %s853
                  %s1118 = sphi %s1029, %s1029
                $region96: #{tpu_custom_call.1} parent=92 // loop_header_branch
                  %1115 = sbr.rel (%p1113) target = $region100
                $region97: #{tpu_custom_call.1} parent=92 // loop_body
                  %v1119 = vld [vmem:[%s1117] sm:$0xff]
                  %1120 = vst [vmem:[%s1118] sm:$0xff] %v1119
                  %v1121 = vld [vmem:[%s1117 + $0x8] sm:$0xff]
                  %1122 = vst [vmem:[%s1118 + $0x8] sm:$0xff] %v1121
                  %v1123 = vld [vmem:[%s1117 + $0x10] sm:$0xff]
                  %1124 = vst [vmem:[%s1118 + $0x10] sm:$0xff] %v1123
                  %v1125 = vld [vmem:[%s1117 + $0x18] sm:$0xff]
                  %1126 = vst [vmem:[%s1118 + $0x18] sm:$0xff] %v1125
                  %v1127 = vld [vmem:[%s1117 + $0x20] sm:$0xff]
                  %1128 = vst [vmem:[%s1118 + $0x20] sm:$0xff] %v1127
                  %v1129 = vld [vmem:[%s1117 + $0x28] sm:$0xff]
                  %1130 = vst [vmem:[%s1118 + $0x28] sm:$0xff] %v1129
                  %v1131 = vld [vmem:[%s1117 + $0x30] sm:$0xff]
                  %1132 = vst [vmem:[%s1118 + $0x30] sm:$0xff] %v1131
                  %v1133 = vld [vmem:[%s1117 + $0x38] sm:$0xff]
                  %1134 = vst [vmem:[%s1118 + $0x38] sm:$0xff] %v1133
                  %v1135 = vld [vmem:[%s1117 + $0x40] sm:$0xff]
                  %1136 = vst [vmem:[%s1118 + $0x80] sm:$0xff] %v1135
                  %v1137 = vld [vmem:[%s1117 + $0x48] sm:$0xff]
                  %1138 = vst [vmem:[%s1118 + $0x88] sm:$0xff] %v1137
                  %v1139 = vld [vmem:[%s1117 + $0x50] sm:$0xff]
                  %1140 = vst [vmem:[%s1118 + $0x90] sm:$0xff] %v1139
                  %v1141 = vld [vmem:[%s1117 + $0x58] sm:$0xff]
                  %1142 = vst [vmem:[%s1118 + $0x98] sm:$0xff] %v1141
                  %v1143 = vld [vmem:[%s1117 + $0x60] sm:$0xff]
                  %1144 = vst [vmem:[%s1118 + $0xa0] sm:$0xff] %v1143
                  %v1145 = vld [vmem:[%s1117 + $0x68] sm:$0xff]
                  %1146 = vst [vmem:[%s1118 + $0xa8] sm:$0xff] %v1145
                  %v1147 = vld [vmem:[%s1117 + $0x70] sm:$0xff]
                  %1148 = vst [vmem:[%s1118 + $0xb0] sm:$0xff] %v1147
                  %v1149 = vld [vmem:[%s1117 + $0x78] sm:$0xff]
                  %1150 = vst [vmem:[%s1118 + $0xb8] sm:$0xff] %v1149
                  %v1151 = vld [vmem:[%s1117 + $0x80] sm:$0xff]
                  %1152 = vst [vmem:[%s1118 + $0x100] sm:$0xff] %v1151
                  %v1153 = vld [vmem:[%s1117 + $0x88] sm:$0xff]
                  %1154 = vst [vmem:[%s1118 + $0x108] sm:$0xff] %v1153
                  %v1155 = vld [vmem:[%s1117 + $0x90] sm:$0xff]
                  %1156 = vst [vmem:[%s1118 + $0x110] sm:$0xff] %v1155
                  %v1157 = vld [vmem:[%s1117 + $0x98] sm:$0xff]
                  %1158 = vst [vmem:[%s1118 + $0x118] sm:$0xff] %v1157
                  %v1159 = vld [vmem:[%s1117 + $0xa0] sm:$0xff]
                  %1160 = vst [vmem:[%s1118 + $0x120] sm:$0xff] %v1159
                  %v1161 = vld [vmem:[%s1117 + $0xa8] sm:$0xff]
                  %1162 = vst [vmem:[%s1118 + $0x128] sm:$0xff] %v1161
                  %v1163 = vld [vmem:[%s1117 + $0xb0] sm:$0xff]
                  %1164 = vst [vmem:[%s1118 + $0x130] sm:$0xff] %v1163
                  %v1165 = vld [vmem:[%s1117 + $0xb8] sm:$0xff]
                  %1166 = vst [vmem:[%s1118 + $0x138] sm:$0xff] %v1165
                  %v1167 = vld [vmem:[%s1117 + $0xc0] sm:$0xff]
                  %1168 = vst [vmem:[%s1118 + $0x180] sm:$0xff] %v1167
                  %v1169 = vld [vmem:[%s1117 + $0xc8] sm:$0xff]
                  %1170 = vst [vmem:[%s1118 + $0x188] sm:$0xff] %v1169
                  %v1171 = vld [vmem:[%s1117 + $0xd0] sm:$0xff]
                  %1172 = vst [vmem:[%s1118 + $0x190] sm:$0xff] %v1171
                  %v1173 = vld [vmem:[%s1117 + $0xd8] sm:$0xff]
                  %1174 = vst [vmem:[%s1118 + $0x198] sm:$0xff] %v1173
                  %v1175 = vld [vmem:[%s1117 + $0xe0] sm:$0xff]
                  %1176 = vst [vmem:[%s1118 + $0x1a0] sm:$0xff] %v1175
                  %v1177 = vld [vmem:[%s1117 + $0xe8] sm:$0xff]
                  %1178 = vst [vmem:[%s1118 + $0x1a8] sm:$0xff] %v1177
                  %v1179 = vld [vmem:[%s1117 + $0xf0] sm:$0xff]
                  %1180 = vst [vmem:[%s1118 + $0x1b0] sm:$0xff] %v1179
                  %v1181 = vld [vmem:[%s1117 + $0xf8] sm:$0xff]
                  %1182 = vst [vmem:[%s1118 + $0x1b8] sm:$0xff] %v1181
                $region98: #{tpu_custom_call.1} parent=92 // loop_footer
                  %s1116 = sadd.s32 1, %s1112
                $region99: #{tpu_custom_call.1} parent=92 // loop_footer_branch
                  %1111 = sbr.rel target = $region95
                $region100: #{tpu_custom_call.1} parent=92 // loop_exit
                  _
              $region93: #{tpu_custom_call.1} parent=77 // pred_fallthru
                _
              // Predicated region
              $region101: #{tpu_custom_call.1} parent=77 // pred_check
                _
              $region102: #{tpu_custom_call.1} parent=77 // pred_check_branch
                %1184 = sbr.rel target = $region104
              $region103: #{tpu_custom_call.1} parent=77 // pred_region
                _
              $region104: #{tpu_custom_call.1} parent=77 // pred_fallthru
                _
            $region78: #{tpu_custom_call.1} parent=73 // pred_fallthru
              _
            // Predicated region
            $region79: #{tpu_custom_call.1} parent=73 // pred_check
              _
            $region80: #{tpu_custom_call.1} parent=73 // pred_check_branch
              %1035 = sbr.rel target = $region82
            $region81: #{tpu_custom_call.1} parent=73 // pred_region
              loop: start=0, step=1, limit=1
              $region83: #{tpu_custom_call.1} parent=81 // loop_pre_header
                _
              $region84: #{tpu_custom_call.1} parent=81 // loop_header
                %s1038 = sphi 0, %s1042
                %p1039 = scmp.ge.s32.totalorder %s1038, 1
                %s1043 = sphi %s853, %s853
                %s1044 = sphi %s1029, %s1029
              $region85: #{tpu_custom_call.1} parent=81 // loop_header_branch
                %1041 = sbr.rel (%p1039) target = $region89
              $region86: #{tpu_custom_call.1} parent=81 // loop_body
                %v1045 = vld [vmem:[%s1043] sm:$0xff]
                %1046 = vst [vmem:[%s1044] sm:$0xff] %v1045
                %v1047 = vld [vmem:[%s1043 + $0x8] sm:$0xff]
                %1048 = vst [vmem:[%s1044 + $0x8] sm:$0xff] %v1047
                %v1049 = vld [vmem:[%s1043 + $0x10] sm:$0xff]
                %1050 = vst [vmem:[%s1044 + $0x10] sm:$0xff] %v1049
                %v1051 = vld [vmem:[%s1043 + $0x18] sm:$0xff]
                %1052 = vst [vmem:[%s1044 + $0x18] sm:$0xff] %v1051
                %v1053 = vld [vmem:[%s1043 + $0x20] sm:$0xff]
                %1054 = vst [vmem:[%s1044 + $0x20] sm:$0xff] %v1053
                %v1055 = vld [vmem:[%s1043 + $0x28] sm:$0xff]
                %1056 = vst [vmem:[%s1044 + $0x28] sm:$0xff] %v1055
                %v1057 = vld [vmem:[%s1043 + $0x30] sm:$0xff]
                %1058 = vst [vmem:[%s1044 + $0x30] sm:$0xff] %v1057
                %v1059 = vld [vmem:[%s1043 + $0x38] sm:$0xff]
                %1060 = vst [vmem:[%s1044 + $0x38] sm:$0xff] %v1059
                %v1061 = vld [vmem:[%s1043 + $0x40] sm:$0xff]
                %1062 = vst [vmem:[%s1044 + $0x80] sm:$0xff] %v1061
                %v1063 = vld [vmem:[%s1043 + $0x48] sm:$0xff]
                %1064 = vst [vmem:[%s1044 + $0x88] sm:$0xff] %v1063
                %v1065 = vld [vmem:[%s1043 + $0x50] sm:$0xff]
                %1066 = vst [vmem:[%s1044 + $0x90] sm:$0xff] %v1065
                %v1067 = vld [vmem:[%s1043 + $0x58] sm:$0xff]
                %1068 = vst [vmem:[%s1044 + $0x98] sm:$0xff] %v1067
                %v1069 = vld [vmem:[%s1043 + $0x60] sm:$0xff]
                %1070 = vst [vmem:[%s1044 + $0xa0] sm:$0xff] %v1069
                %v1071 = vld [vmem:[%s1043 + $0x68] sm:$0xff]
                %1072 = vst [vmem:[%s1044 + $0xa8] sm:$0xff] %v1071
                %v1073 = vld [vmem:[%s1043 + $0x70] sm:$0xff]
                %1074 = vst [vmem:[%s1044 + $0xb0] sm:$0xff] %v1073
                %v1075 = vld [vmem:[%s1043 + $0x78] sm:$0xff]
                %1076 = vst [vmem:[%s1044 + $0xb8] sm:$0xff] %v1075
                %v1077 = vld [vmem:[%s1043 + $0x80] sm:$0xff]
                %1078 = vst [vmem:[%s1044 + $0x100] sm:$0xff] %v1077
                %v1079 = vld [vmem:[%s1043 + $0x88] sm:$0xff]
                %1080 = vst [vmem:[%s1044 + $0x108] sm:$0xff] %v1079
                %v1081 = vld [vmem:[%s1043 + $0x90] sm:$0xff]
                %1082 = vst [vmem:[%s1044 + $0x110] sm:$0xff] %v1081
                %v1083 = vld [vmem:[%s1043 + $0x98] sm:$0xff]
                %1084 = vst [vmem:[%s1044 + $0x118] sm:$0xff] %v1083
                %v1085 = vld [vmem:[%s1043 + $0xa0] sm:$0xff]
                %1086 = vst [vmem:[%s1044 + $0x120] sm:$0xff] %v1085
                %v1087 = vld [vmem:[%s1043 + $0xa8] sm:$0xff]
                %1088 = vst [vmem:[%s1044 + $0x128] sm:$0xff] %v1087
                %v1089 = vld [vmem:[%s1043 + $0xb0] sm:$0xff]
                %1090 = vst [vmem:[%s1044 + $0x130] sm:$0xff] %v1089
                %v1091 = vld [vmem:[%s1043 + $0xb8] sm:$0xff]
                %1092 = vst [vmem:[%s1044 + $0x138] sm:$0xff] %v1091
                %v1093 = vld [vmem:[%s1043 + $0xc0] sm:$0xff]
                %1094 = vst [vmem:[%s1044 + $0x180] sm:$0xff] %v1093
                %v1095 = vld [vmem:[%s1043 + $0xc8] sm:$0xff]
                %1096 = vst [vmem:[%s1044 + $0x188] sm:$0xff] %v1095
                %v1097 = vld [vmem:[%s1043 + $0xd0] sm:$0xff]
                %1098 = vst [vmem:[%s1044 + $0x190] sm:$0xff] %v1097
                %v1099 = vld [vmem:[%s1043 + $0xd8] sm:$0xff]
                %1100 = vst [vmem:[%s1044 + $0x198] sm:$0xff] %v1099
                %v1101 = vld [vmem:[%s1043 + $0xe0] sm:$0xff]
                %1102 = vst [vmem:[%s1044 + $0x1a0] sm:$0xff] %v1101
                %v1103 = vld [vmem:[%s1043 + $0xe8] sm:$0xff]
                %1104 = vst [vmem:[%s1044 + $0x1a8] sm:$0xff] %v1103
                %v1105 = vld [vmem:[%s1043 + $0xf0] sm:$0xff]
                %1106 = vst [vmem:[%s1044 + $0x1b0] sm:$0xff] %v1105
                %v1107 = vld [vmem:[%s1043 + $0xf8] sm:$0xff]
                %1108 = vst [vmem:[%s1044 + $0x1b8] sm:$0xff] %v1107
              $region87: #{tpu_custom_call.1} parent=81 // loop_footer
                %s1042 = sadd.s32 1, %s1038
              $region88: #{tpu_custom_call.1} parent=81 // loop_footer_branch
                %1037 = sbr.rel target = $region84
              $region89: #{tpu_custom_call.1} parent=81 // loop_exit
                _
            $region82: #{tpu_custom_call.1} parent=73 // pred_fallthru
              _
          $region74: #{tpu_custom_call.1} parent=69 // pred_fallthru
            _
          %1185 = vnop
        $region70: #{tpu_custom_call.1} parent=27 // pred_fallthru
          _
        // Predicated region
        $region105: #{tpu_custom_call.1} parent=27 // pred_check
          %p1186 = pneg %p153
        $region106: #{tpu_custom_call.1} parent=27 // pred_check_branch
          %1188 = sbr.rel (%p1186) target = $region108
        $region107: #{tpu_custom_call.1} parent=27 // pred_region
          %s1189 = smul.u32 8, %s21
          %s1190 = smul.addr %s20, 64
          %s1191 = sadd.s32 %s1189, %s1190
          %s1192 = smul.addr %s1191, 8
          %s1193 = scalar_lea.vmem %s4, %s1192
          // Predicated region
          $region109: #{tpu_custom_call.1} parent=107 // pred_check
            _
          $region110: #{tpu_custom_call.1} parent=107 // pred_check_branch
            %1195 = sbr.rel (0) target = $region112
          $region111: #{tpu_custom_call.1} parent=107 // pred_region
            // Predicated region
            $region113: #{tpu_custom_call.1} parent=111 // pred_check
              _
            $region114: #{tpu_custom_call.1} parent=111 // pred_check_branch
              %1197 = sbr.rel (0) target = $region116
            $region115: #{tpu_custom_call.1} parent=111 // pred_region
              // Predicated region
              $region128: #{tpu_custom_call.1} parent=115 // pred_check
                _
              $region129: #{tpu_custom_call.1} parent=115 // pred_check_branch
                %1274 = sbr.rel (0) target = $region131
              $region130: #{tpu_custom_call.1} parent=115 // pred_region
                loop: start=0, step=1, limit=1
                $region132: #{tpu_custom_call.1} parent=130 // loop_pre_header
                  _
                $region133: #{tpu_custom_call.1} parent=130 // loop_header
                  %s1276 = sphi 0, %s1280
                  %p1277 = scmp.ge.s32.totalorder %s1276, 1
                  %s1281 = sphi %s857, %s857
                  %s1282 = sphi %s1193, %s1193
                $region134: #{tpu_custom_call.1} parent=130 // loop_header_branch
                  %1279 = sbr.rel (%p1277) target = $region138
                $region135: #{tpu_custom_call.1} parent=130 // loop_body
                  %v1283 = vld [vmem:[%s1281] sm:$0xff]
                  %1284 = vst [vmem:[%s1282] sm:$0xff] %v1283
                  %v1285 = vld [vmem:[%s1281 + $0x8] sm:$0xff]
                  %1286 = vst [vmem:[%s1282 + $0x8] sm:$0xff] %v1285
                  %v1287 = vld [vmem:[%s1281 + $0x10] sm:$0xff]
                  %1288 = vst [vmem:[%s1282 + $0x10] sm:$0xff] %v1287
                  %v1289 = vld [vmem:[%s1281 + $0x18] sm:$0xff]
                  %1290 = vst [vmem:[%s1282 + $0x18] sm:$0xff] %v1289
                  %v1291 = vld [vmem:[%s1281 + $0x20] sm:$0xff]
                  %1292 = vst [vmem:[%s1282 + $0x20] sm:$0xff] %v1291
                  %v1293 = vld [vmem:[%s1281 + $0x28] sm:$0xff]
                  %1294 = vst [vmem:[%s1282 + $0x28] sm:$0xff] %v1293
                  %v1295 = vld [vmem:[%s1281 + $0x30] sm:$0xff]
                  %1296 = vst [vmem:[%s1282 + $0x30] sm:$0xff] %v1295
                  %v1297 = vld [vmem:[%s1281 + $0x38] sm:$0xff]
                  %1298 = vst [vmem:[%s1282 + $0x38] sm:$0xff] %v1297
                  %v1299 = vld [vmem:[%s1281 + $0x40] sm:$0xff]
                  %1300 = vst [vmem:[%s1282 + $0x80] sm:$0xff] %v1299
                  %v1301 = vld [vmem:[%s1281 + $0x48] sm:$0xff]
                  %1302 = vst [vmem:[%s1282 + $0x88] sm:$0xff] %v1301
                  %v1303 = vld [vmem:[%s1281 + $0x50] sm:$0xff]
                  %1304 = vst [vmem:[%s1282 + $0x90] sm:$0xff] %v1303
                  %v1305 = vld [vmem:[%s1281 + $0x58] sm:$0xff]
                  %1306 = vst [vmem:[%s1282 + $0x98] sm:$0xff] %v1305
                  %v1307 = vld [vmem:[%s1281 + $0x60] sm:$0xff]
                  %1308 = vst [vmem:[%s1282 + $0xa0] sm:$0xff] %v1307
                  %v1309 = vld [vmem:[%s1281 + $0x68] sm:$0xff]
                  %1310 = vst [vmem:[%s1282 + $0xa8] sm:$0xff] %v1309
                  %v1311 = vld [vmem:[%s1281 + $0x70] sm:$0xff]
                  %1312 = vst [vmem:[%s1282 + $0xb0] sm:$0xff] %v1311
                  %v1313 = vld [vmem:[%s1281 + $0x78] sm:$0xff]
                  %1314 = vst [vmem:[%s1282 + $0xb8] sm:$0xff] %v1313
                  %v1315 = vld [vmem:[%s1281 + $0x80] sm:$0xff]
                  %1316 = vst [vmem:[%s1282 + $0x100] sm:$0xff] %v1315
                  %v1317 = vld [vmem:[%s1281 + $0x88] sm:$0xff]
                  %1318 = vst [vmem:[%s1282 + $0x108] sm:$0xff] %v1317
                  %v1319 = vld [vmem:[%s1281 + $0x90] sm:$0xff]
                  %1320 = vst [vmem:[%s1282 + $0x110] sm:$0xff] %v1319
                  %v1321 = vld [vmem:[%s1281 + $0x98] sm:$0xff]
                  %1322 = vst [vmem:[%s1282 + $0x118] sm:$0xff] %v1321
                  %v1323 = vld [vmem:[%s1281 + $0xa0] sm:$0xff]
                  %1324 = vst [vmem:[%s1282 + $0x120] sm:$0xff] %v1323
                  %v1325 = vld [vmem:[%s1281 + $0xa8] sm:$0xff]
                  %1326 = vst [vmem:[%s1282 + $0x128] sm:$0xff] %v1325
                  %v1327 = vld [vmem:[%s1281 + $0xb0] sm:$0xff]
                  %1328 = vst [vmem:[%s1282 + $0x130] sm:$0xff] %v1327
                  %v1329 = vld [vmem:[%s1281 + $0xb8] sm:$0xff]
                  %1330 = vst [vmem:[%s1282 + $0x138] sm:$0xff] %v1329
                  %v1331 = vld [vmem:[%s1281 + $0xc0] sm:$0xff]
                  %1332 = vst [vmem:[%s1282 + $0x180] sm:$0xff] %v1331
                  %v1333 = vld [vmem:[%s1281 + $0xc8] sm:$0xff]
                  %1334 = vst [vmem:[%s1282 + $0x188] sm:$0xff] %v1333
                  %v1335 = vld [vmem:[%s1281 + $0xd0] sm:$0xff]
                  %1336 = vst [vmem:[%s1282 + $0x190] sm:$0xff] %v1335
                  %v1337 = vld [vmem:[%s1281 + $0xd8] sm:$0xff]
                  %1338 = vst [vmem:[%s1282 + $0x198] sm:$0xff] %v1337
                  %v1339 = vld [vmem:[%s1281 + $0xe0] sm:$0xff]
                  %1340 = vst [vmem:[%s1282 + $0x1a0] sm:$0xff] %v1339
                  %v1341 = vld [vmem:[%s1281 + $0xe8] sm:$0xff]
                  %1342 = vst [vmem:[%s1282 + $0x1a8] sm:$0xff] %v1341
                  %v1343 = vld [vmem:[%s1281 + $0xf0] sm:$0xff]
                  %1344 = vst [vmem:[%s1282 + $0x1b0] sm:$0xff] %v1343
                  %v1345 = vld [vmem:[%s1281 + $0xf8] sm:$0xff]
                  %1346 = vst [vmem:[%s1282 + $0x1b8] sm:$0xff] %v1345
                $region136: #{tpu_custom_call.1} parent=130 // loop_footer
                  %s1280 = sadd.s32 1, %s1276
                $region137: #{tpu_custom_call.1} parent=130 // loop_footer_branch
                  %1275 = sbr.rel target = $region133
                $region138: #{tpu_custom_call.1} parent=130 // loop_exit
                  _
              $region131: #{tpu_custom_call.1} parent=115 // pred_fallthru
                _
              // Predicated region
              $region139: #{tpu_custom_call.1} parent=115 // pred_check
                _
              $region140: #{tpu_custom_call.1} parent=115 // pred_check_branch
                %1348 = sbr.rel target = $region142
              $region141: #{tpu_custom_call.1} parent=115 // pred_region
                _
              $region142: #{tpu_custom_call.1} parent=115 // pred_fallthru
                _
            $region116: #{tpu_custom_call.1} parent=111 // pred_fallthru
              _
            // Predicated region
            $region117: #{tpu_custom_call.1} parent=111 // pred_check
              _
            $region118: #{tpu_custom_call.1} parent=111 // pred_check_branch
              %1199 = sbr.rel target = $region120
            $region119: #{tpu_custom_call.1} parent=111 // pred_region
              loop: start=0, step=1, limit=1
              $region121: #{tpu_custom_call.1} parent=119 // loop_pre_header
                _
              $region122: #{tpu_custom_call.1} parent=119 // loop_header
                %s1202 = sphi 0, %s1206
                %p1203 = scmp.ge.s32.totalorder %s1202, 1
                %s1207 = sphi %s857, %s857
                %s1208 = sphi %s1193, %s1193
              $region123: #{tpu_custom_call.1} parent=119 // loop_header_branch
                %1205 = sbr.rel (%p1203) target = $region127
              $region124: #{tpu_custom_call.1} parent=119 // loop_body
                %v1209 = vld [vmem:[%s1207] sm:$0xff]
                %1210 = vst [vmem:[%s1208] sm:$0xff] %v1209
                %v1211 = vld [vmem:[%s1207 + $0x8] sm:$0xff]
                %1212 = vst [vmem:[%s1208 + $0x8] sm:$0xff] %v1211
                %v1213 = vld [vmem:[%s1207 + $0x10] sm:$0xff]
                %1214 = vst [vmem:[%s1208 + $0x10] sm:$0xff] %v1213
                %v1215 = vld [vmem:[%s1207 + $0x18] sm:$0xff]
                %1216 = vst [vmem:[%s1208 + $0x18] sm:$0xff] %v1215
                %v1217 = vld [vmem:[%s1207 + $0x20] sm:$0xff]
                %1218 = vst [vmem:[%s1208 + $0x20] sm:$0xff] %v1217
                %v1219 = vld [vmem:[%s1207 + $0x28] sm:$0xff]
                %1220 = vst [vmem:[%s1208 + $0x28] sm:$0xff] %v1219
                %v1221 = vld [vmem:[%s1207 + $0x30] sm:$0xff]
                %1222 = vst [vmem:[%s1208 + $0x30] sm:$0xff] %v1221
                %v1223 = vld [vmem:[%s1207 + $0x38] sm:$0xff]
                %1224 = vst [vmem:[%s1208 + $0x38] sm:$0xff] %v1223
                %v1225 = vld [vmem:[%s1207 + $0x40] sm:$0xff]
                %1226 = vst [vmem:[%s1208 + $0x80] sm:$0xff] %v1225
                %v1227 = vld [vmem:[%s1207 + $0x48] sm:$0xff]
                %1228 = vst [vmem:[%s1208 + $0x88] sm:$0xff] %v1227
                %v1229 = vld [vmem:[%s1207 + $0x50] sm:$0xff]
                %1230 = vst [vmem:[%s1208 + $0x90] sm:$0xff] %v1229
                %v1231 = vld [vmem:[%s1207 + $0x58] sm:$0xff]
                %1232 = vst [vmem:[%s1208 + $0x98] sm:$0xff] %v1231
                %v1233 = vld [vmem:[%s1207 + $0x60] sm:$0xff]
                %1234 = vst [vmem:[%s1208 + $0xa0] sm:$0xff] %v1233
                %v1235 = vld [vmem:[%s1207 + $0x68] sm:$0xff]
                %1236 = vst [vmem:[%s1208 + $0xa8] sm:$0xff] %v1235
                %v1237 = vld [vmem:[%s1207 + $0x70] sm:$0xff]
                %1238 = vst [vmem:[%s1208 + $0xb0] sm:$0xff] %v1237
                %v1239 = vld [vmem:[%s1207 + $0x78] sm:$0xff]
                %1240 = vst [vmem:[%s1208 + $0xb8] sm:$0xff] %v1239
                %v1241 = vld [vmem:[%s1207 + $0x80] sm:$0xff]
                %1242 = vst [vmem:[%s1208 + $0x100] sm:$0xff] %v1241
                %v1243 = vld [vmem:[%s1207 + $0x88] sm:$0xff]
                %1244 = vst [vmem:[%s1208 + $0x108] sm:$0xff] %v1243
                %v1245 = vld [vmem:[%s1207 + $0x90] sm:$0xff]
                %1246 = vst [vmem:[%s1208 + $0x110] sm:$0xff] %v1245
                %v1247 = vld [vmem:[%s1207 + $0x98] sm:$0xff]
                %1248 = vst [vmem:[%s1208 + $0x118] sm:$0xff] %v1247
                %v1249 = vld [vmem:[%s1207 + $0xa0] sm:$0xff]
                %1250 = vst [vmem:[%s1208 + $0x120] sm:$0xff] %v1249
                %v1251 = vld [vmem:[%s1207 + $0xa8] sm:$0xff]
                %1252 = vst [vmem:[%s1208 + $0x128] sm:$0xff] %v1251
                %v1253 = vld [vmem:[%s1207 + $0xb0] sm:$0xff]
                %1254 = vst [vmem:[%s1208 + $0x130] sm:$0xff] %v1253
                %v1255 = vld [vmem:[%s1207 + $0xb8] sm:$0xff]
                %1256 = vst [vmem:[%s1208 + $0x138] sm:$0xff] %v1255
                %v1257 = vld [vmem:[%s1207 + $0xc0] sm:$0xff]
                %1258 = vst [vmem:[%s1208 + $0x180] sm:$0xff] %v1257
                %v1259 = vld [vmem:[%s1207 + $0xc8] sm:$0xff]
                %1260 = vst [vmem:[%s1208 + $0x188] sm:$0xff] %v1259
                %v1261 = vld [vmem:[%s1207 + $0xd0] sm:$0xff]
                %1262 = vst [vmem:[%s1208 + $0x190] sm:$0xff] %v1261
                %v1263 = vld [vmem:[%s1207 + $0xd8] sm:$0xff]
                %1264 = vst [vmem:[%s1208 + $0x198] sm:$0xff] %v1263
                %v1265 = vld [vmem:[%s1207 + $0xe0] sm:$0xff]
                %1266 = vst [vmem:[%s1208 + $0x1a0] sm:$0xff] %v1265
                %v1267 = vld [vmem:[%s1207 + $0xe8] sm:$0xff]
                %1268 = vst [vmem:[%s1208 + $0x1a8] sm:$0xff] %v1267
                %v1269 = vld [vmem:[%s1207 + $0xf0] sm:$0xff]
                %1270 = vst [vmem:[%s1208 + $0x1b0] sm:$0xff] %v1269
                %v1271 = vld [vmem:[%s1207 + $0xf8] sm:$0xff]
                %1272 = vst [vmem:[%s1208 + $0x1b8] sm:$0xff] %v1271
              $region125: #{tpu_custom_call.1} parent=119 // loop_footer
                %s1206 = sadd.s32 1, %s1202
              $region126: #{tpu_custom_call.1} parent=119 // loop_footer_branch
                %1201 = sbr.rel target = $region122
              $region127: #{tpu_custom_call.1} parent=119 // loop_exit
                _
            $region120: #{tpu_custom_call.1} parent=111 // pred_fallthru
              _
          $region112: #{tpu_custom_call.1} parent=107 // pred_fallthru
            _
          %1349 = vnop
        $region108: #{tpu_custom_call.1} parent=27 // pred_fallthru
          _
      $region28: #{tpu_custom_call.1} parent=5 // pred_fallthru
        _
      %p1350 = scmp.le.s32.totalorder 2, %s11
      // Predicated region
      $region143: #{tpu_custom_call.1} parent=5 // pred_check
        %p1351 = pneg %p1350
      $region144: #{tpu_custom_call.1} parent=5 // pred_check_branch
        %1353 = sbr.rel (%p1351) target = $region146
      $region145: #{tpu_custom_call.1} parent=5 // pred_region
        %s1354 = ssub.s32 %s11, 2
        // Predicated region
        $region147: #{tpu_custom_call.1} parent=145 // pred_check
          %p1355 = pneg %p103
        $region148: #{tpu_custom_call.1} parent=145 // pred_check_branch
          %1357 = sbr.rel (%p1355) target = $region150
        $region149: #{tpu_custom_call.1} parent=145 // pred_region
          %s1358 = sand.u32 %s88, 1
          %s1359 = sand.u32 %s88, 1
          %s1360 = smul.addr %s1359, 256
          %s1361 = scalar_lea.vmem [#allocation2], %s1360
        $region150: #{tpu_custom_call.1} parent=145 // pred_fallthru
          _
        // Predicated region
        $region151: #{tpu_custom_call.1} parent=145 // pred_check
          %p1362 = pneg %p131
        $region152: #{tpu_custom_call.1} parent=145 // pred_check_branch
          %1364 = sbr.rel (%p1362) target = $region154
        $region153: #{tpu_custom_call.1} parent=145 // pred_region
          %s1365 = sand.u32 %s116, 1
          %s1366 = sand.u32 %s116, 1
          %s1367 = smul.addr %s1366, 256
          %s1368 = scalar_lea.vmem [#allocation3], %s1367
        $region154: #{tpu_custom_call.1} parent=145 // pred_fallthru
          _
        // Predicated region
        $region155: #{tpu_custom_call.1} parent=145 // pred_check
          %p1369 = pneg %p159
        $region156: #{tpu_custom_call.1} parent=145 // pred_check_branch
          %1371 = sbr.rel (%p1369) target = $region158
        $region157: #{tpu_custom_call.1} parent=145 // pred_region
          %s1372 = sand.u32 %s144, 1
          %s1373 = sand.u32 %s144, 1
          %s1374 = smul.addr %s1373, 256
          %s1375 = scalar_lea.vmem [#allocation4], %s1374
        $region158: #{tpu_custom_call.1} parent=145 // pred_fallthru
          _
      $region146: #{tpu_custom_call.1} parent=5 // pred_fallthru
        _
    $region6: #{tpu_custom_call.1} parent=1 // loop_footer
      %s15 = sadd.s32 1, %s11
    $region7: #{tpu_custom_call.1} parent=1 // loop_footer_branch
      %10 = sbr.rel target = $region3
    $region8: #{tpu_custom_call.1} parent=1 // loop_exit
      _

</llo_original>
